<compile_context>
chip_gen: v7x
topology: tpu7x:2x2x1
jax: 0.10.0
libtpu: 0.0.40
codegen_flags: <defaults>
</compile_context>

<pallas_src>
import functools
import math

import numpy as np
import jax
import jax.numpy as jnp
from jax import lax
from jax.experimental import pallas as pl
from jax.experimental.pallas import tpu as pltpu

LANE = 128


def _round_up(v, m):
    return (v + m - 1) // m * m


# ----------------------------------------------------------------------------
# Filtermap parameter setup (mirrors _ConvNd_filtermap / Conv2d_filtermap)
# ----------------------------------------------------------------------------
_OUT_CH_TABLE = {16: (2, 2, 4), 32: (4, 4, 2), 64: (4, 4, 4),
                 128: (8, 4, 4), 256: (8, 8, 4), 512: (8, 8, 8)}
_OUT_CH_LIST_CIFAR = (16, 32, 64, 128, 256, 521)   # (521 typo kept from source)


def filtermap_config(in_ch, out_ch, cc_1x1, k, groups=1, is_cifar=False):
    """Replicates the sample_* / stride_* / filtermap-shape logic of __init__."""
    if k == 1:
        sy = sx = 1
        sc = out_ch
        reduced = (in_ch // groups) * out_ch / cc_1x1
        assert reduced >= in_ch
        sty = stx = 1
        stc = reduced // sc          # float floor-division, as in the torch code
    else:
        if is_cifar:
            assert out_ch in _OUT_CH_LIST_CIFAR, f"undefined out_channels={out_ch}"
            sy, sx, sc = 2, out_ch // 4, 2
        else:
            sy, sx, sc = _OUT_CH_TABLE[out_ch]
        if in_ch // groups == 3:
            if out_ch == 64:
                sy, sx, sc = 8, 8, 1
            elif out_ch == 16:
                sy, sx, sc = 4, 4, 1
        sty = stx = 2
        stc = (in_ch // groups) // sc
    fm_h = sy * sty
    fm_w = sx * stx
    fm_c = int(sc * stc)
    return dict(sy=sy, sx=sx, sc=sc, sty=sty, stx=stx, stc=stc,
                fm_c=fm_c, fm_h=fm_h, fm_w=fm_w)


def compute_ids(in_ch, k_h, k_w, sy, sx, sc, sty, stx, stc, pad_h, pad_w):
    """Exactly mirrors Conv2d_filtermap.reset_parameters1 index construction."""
    ids = np.array([y * pad_w + x for y in range(k_h) for x in range(k_w)],
                   dtype=np.int64)
    ids0 = ids.copy()
    for c in range(1, in_ch):
        ids = np.concatenate([ids, ids0 + c * pad_h * pad_w])
    ids0 = ids.copy()
    for y in range(sy):
        for x in range(sx):
            if y == 0 and x == 0:
                continue
            ss = y * sty * pad_w + x * stx
            ids = np.concatenate([ids, ids0 + ss])
    ids0 = ids.copy()
    for c in range(1, sc):
        ids = np.concatenate([ids, ids0 + int(c * stc * pad_h * pad_w)])
    return ids


def extract_weight(fm, cfg, in_ch, out_ch, k, binary_filtermap=False):
    """Mirrors Conv2d_filtermap.extract_filters (parameter-setup glue)."""
    fm_pad = jnp.concatenate([fm, fm], axis=0)
    H, W = fm.shape[1], fm.shape[2]
    if H > 1 and W > 1:
        fm_pad = jnp.concatenate([fm_pad, fm_pad[:, 1:2, :]], axis=1)
        fm_pad = jnp.concatenate([fm_pad, fm_pad[:, :, 1:2]], axis=2)
        pad_h, pad_w = H + 1, W + 1
    else:
        pad_h, pad_w = H, W
    ids = compute_ids(in_ch, k, k, cfg['sy'], cfg['sx'], cfg['sc'],
                      cfg['sty'], cfg['stx'], cfg['stc'], pad_h, pad_w)
    flat = fm_pad.reshape(-1)
    w = flat[jnp.asarray(ids, dtype=jnp.int32)].reshape(out_ch, in_ch, k, k)
    if binary_filtermap:
        l1 = jnp.sum(jnp.abs(w), axis=(1, 2, 3), keepdims=True)
        w = jnp.sign(w) * l1
    return w


def make_conv_params(key, in_channels, out_channels, cc_1x1, kernel_size, *,
                     bias=True, groups=1, is_cifar=False):
    """Deterministic parameter construction (mirrors reset_parameters)."""
    cfg = filtermap_config(in_channels, out_channels, cc_1x1, kernel_size,
                           groups=groups, is_cifar=is_cifar)
    n = in_channels * kernel_size * kernel_size
    stdv = 1.0 / math.sqrt(n)
    k_fm, k_b = jax.random.split(key)
    fm = jax.random.uniform(k_fm, (cfg['fm_c'], cfg['fm_h'], cfg['fm_w']),
                            jnp.float32, -stdv, stdv)
    b = (jax.random.uniform(k_b, (out_channels,), jnp.float32, -stdv, stdv)
         if bias else None)
    return fm, b, cfg


# ----------------------------------------------------------------------------
# Pallas kernels
# ----------------------------------------------------------------------------
def _mm_bias_kernel(x_ref, w_ref, b_ref, o_ref):
    # (TM, Cin_p) bf16 @ (Cin_p, Cout_p) bf16 -> f32, + bias (fused epilogue).
    o_ref[...] = (jnp.dot(x_ref[...], w_ref[...],
                          preferred_element_type=jnp.float32) + b_ref[...])


def _conv_kxk_bias_kernel(xp_ref, w_ref, b_ref, o_ref, acc_ref, *,
                          kh, kw, sh, sw, ho, wo):
    """kxk conv for one image: kh matmuls with K packed to kw*Cin, fused bias.

    xp_ref : (1, Hp, Wp, Cin_p)      bf16   zero-padded NHWC input (one image)
    w_ref  : (kh, kw*Cin_p, Cout_p)  bf16   weight, dx shifts packed along K
    b_ref  : (1, Cout_p)             f32
    o_ref  : (1, Ho*Wo, Cout_p)      f32
    acc_ref: (Ho*Wo, Cout_p)         f32    VMEM scratch accumulator
    """
    # Bias fused into the accumulator init -> no separate epilogue add pass.
    acc_ref[...] = jnp.broadcast_to(b_ref[...], acc_ref.shape)
    # f32 working copy for the (possibly strided) slices / concats; matmul
    # operands are cast back to bf16 so the MXU runs at its bf16 rate.  The
    # cast is one cheap VPU pass over Hp*Wp*Cin_p, negligible vs. the matmuls.
    xp = xp_ref[0].astype(jnp.float32)                 # (Hp, Wp, Cin_p)
    wp_full = xp.shape[1]
    cin = xp.shape[2]
    for dy in range(kh):
        rows = lax.slice(xp, (dy, 0, 0),
                         (dy + (ho - 1) * sh + 1, wp_full, cin),
                         (sh, 1, 1))                   # (Ho, Wp, Cin_p)
        cols = [lax.slice(rows, (0, dx, 0),
                          (ho, dx + (wo - 1) * sw + 1, cin),
                          (1, sw, 1)) for dx in range(kw)]
        xcat = jnp.concatenate(cols, axis=-1).reshape(ho * wo, kw * cin)
        acc_ref[...] += jnp.dot(xcat.astype(jnp.bfloat16), w_ref[dy],
                                preferred_element_type=jnp.float32)
    o_ref[0] = acc_ref[...]


# ----------------------------------------------------------------------------
# Conv2d wrapper around the Pallas kernels
# ----------------------------------------------------------------------------
def _pick_tm(M, cin_p, cout_p, *, cap=1024, budget=8 << 20):
    """Largest row tile (multiple of 8) whose double-buffered in+out blocks fit
    comfortably inside the per-call VMEM budget."""
    bytes_per_row = 2 * (cin_p * 2) + 2 * (cout_p * 4)   # bf16 in x2, f32 out x2
    tm = max(8, min(cap, (budget // bytes_per_row) // 8 * 8))
    return min(tm, _round_up(M, 8))


def conv2d_pallas(x_nchw, w_oihw, bias, stride, padding):
    sh, sw = (stride, stride) if isinstance(stride, int) else tuple(stride)
    ph, pw = (padding, padding) if isinstance(padding, int) else tuple(padding)
    N, Cin, H, W = x_nchw.shape
    Cout, _, kh, kw = w_oihw.shape
    Ho = (H + 2 * ph - kh) // sh + 1
    Wo = (W + 2 * pw - kw) // sw + 1

    cin_p = _round_up(Cin, LANE)       # lane-dense channel axes (multiple of 128)
    cout_p = _round_up(Cout, LANE)

    # NCHW -> NHWC, bf16 activations (halves HBM/VMEM bytes, bf16 MXU rate),
    # zero-pad spatial halo + channels once in the wrapper.
    x_nhwc = jnp.transpose(x_nchw, (0, 2, 3, 1)).astype(jnp.bfloat16)
    x_pad = jnp.pad(x_nhwc, ((0, 0), (ph, ph), (pw, pw), (0, cin_p - Cin)))

    # OIHW -> (kh, kw, I, O), channel-padded, bf16.
    w_hwio = jnp.transpose(w_oihw, (2, 3, 1, 0))
    w_hwio = jnp.pad(w_hwio, ((0, 0), (0, 0), (0, cin_p - Cin),
                              (0, cout_p - Cout))).astype(jnp.bfloat16)

    if bias is None:
        b = jnp.zeros((1, cout_p), jnp.float32)
    else:
        b = jnp.pad(bias.astype(jnp.float32),
                    (0, cout_p - Cout)).reshape(1, cout_p)

    if kh == 1 and kw == 1:
        # 1x1 conv == row-tiled matmul.  Stride is applied BEFORE the matmul so
        # no FLOPs / HBM bytes are spent on rows that would be thrown away.
        xs = x_pad[:, : (Ho - 1) * sh + 1 : sh, : (Wo - 1) * sw + 1 : sw, :]
        M = N * Ho * Wo
        tm = _pick_tm(M, cin_p, cout_p)
        m_pad = _round_up(M, tm)
        x2d = jnp.pad(xs.reshape(M, cin_p), ((0, m_pad - M), (0, 0)))
        w2d = w_hwio.reshape(cin_p, cout_p)
        out2d = pl.pallas_call(
            _mm_bias_kernel,
            grid=(m_pad // tm,),
            in_specs=[pl.BlockSpec((tm, cin_p), lambda i: (i, 0)),
                      pl.BlockSpec((cin_p, cout_p), lambda i: (0, 0)),   # resident
                      pl.BlockSpec((1, cout_p), lambda i: (0, 0))],      # resident
            out_specs=pl.BlockSpec((tm, cout_p), lambda i: (i, 0)),
            out_shape=jax.ShapeDtypeStruct((m_pad, cout_p), jnp.float32),
            compiler_params=pltpu.CompilerParams(
                dimension_semantics=("parallel",)),
        )(x2d, w2d, b)
        out = out2d[:M, :Cout].reshape(N, Ho, Wo, Cout)
    else:
        Hp, Wp = H + 2 * ph, W + 2 * pw
        # Pack the kw dx-shifted (Cin_p, Cout_p) weight slices along the
        # contraction axis: the kernel then needs only kh matmuls with
        # K = kw*Cin_p (better MXU fill, fewer push/drain overheads).
        w_packed = w_hwio.reshape(kh, kw * cin_p, cout_p)
        kern = functools.partial(_conv_kxk_bias_kernel, kh=kh, kw=kw,
                                 sh=sh, sw=sw, ho=Ho, wo=Wo)
        # TODO(synk): for very large images, additionally tile Ho (with halo)
        # to bound the per-step VMEM footprint further.
        out3 = pl.pallas_call(
            kern,
            grid=(N,),
            in_specs=[pl.BlockSpec((1, Hp, Wp, cin_p), lambda n: (n, 0, 0, 0)),
                      pl.BlockSpec((kh, kw * cin_p, cout_p),
                                   lambda n: (0, 0, 0)),                 # resident
                      pl.BlockSpec((1, cout_p), lambda n: (0, 0))],      # resident
            out_specs=pl.BlockSpec((1, Ho * Wo, cout_p), lambda n: (n, 0, 0)),
            out_shape=jax.ShapeDtypeStruct((N, Ho * Wo, cout_p), jnp.float32),
            scratch_shapes=[pltpu.VMEM((Ho * Wo, cout_p), jnp.float32)],
            compiler_params=pltpu.CompilerParams(
                dimension_semantics=("parallel",)),
        )(x_pad, w_packed, b)
        out = out3[:, :, :Cout].reshape(N, Ho, Wo, Cout)

    return jnp.transpose(out, (0, 3, 1, 2))


def conv2d_filtermap_forward(x_nchw, filtermap, bias, *, in_channels, out_channels,
                             channel_compression_1x1, kernel_size, stride=1,
                             padding=0, dilation=1, groups=1,
                             binary_filtermap=False, is_cifar=False):
    """Equivalent of Conv2d_filtermap.forward: extract_filters() then conv2d."""
    assert dilation in (1, (1, 1)), "TODO(synk): dilation != 1 not implemented"
    assert groups == 1, "TODO(synk): grouped convolution not implemented"
    cfg = filtermap_config(in_channels, out_channels, channel_compression_1x1,
                           kernel_size, groups=groups, is_cifar=is_cifar)
    w = extract_weight(filtermap, cfg, in_channels // groups, out_channels,
                       kernel_size, binary_filtermap)
    return conv2d_pallas(x_nchw, w, bias, stride, padding)


# ----------------------------------------------------------------------------
# Pure-JAX reference (verification only)
# ----------------------------------------------------------------------------
def ref_conv2d(x_nchw, w_oihw, bias, stride, padding):
    sh, sw = (stride, stride) if isinstance(stride, int) else tuple(stride)
    ph, pw = (padding, padding) if isinstance(padding, int) else tuple(padding)
    # Round operands to bf16 (like the Pallas kernels do) but convolve at full
    # f32 precision, so only accumulation-order noise remains in the comparison.
    xr = x_nchw.astype(jnp.bfloat16).astype(jnp.float32)
    wr = w_oihw.astype(jnp.bfloat16).astype(jnp.float32)
    out = lax.conv_general_dilated(
        xr, wr, (sh, sw), ((ph, ph), (pw, pw)),
        dimension_numbers=('NCHW', 'OIHW', 'NCHW'),
        precision=lax.Precision.HIGHEST)
    if bias is not None:
        out = out + bias[None, :, None, None]
    return out


# ----------------------------------------------------------------------------
if __name__ == "__main__":
    key = jax.random.PRNGKey(0)
    k_x, k_p1, k_p2, k_p3 = jax.random.split(key, 4)

    N, Cin, H, W = 2, 16, 16, 16
    x = jax.random.normal(k_x, (N, Cin, H, W), jnp.float32)

    cases = [
        dict(name="3x3_s1", out_channels=16, kernel_size=3, stride=1, padding=1,
             cc_1x1=2, binary=False, key=k_p1),
        dict(name="3x3_s2", out_channels=32, kernel_size=3, stride=2, padding=1,
             cc_1x1=2, binary=False, key=k_p2),
        dict(name="1x1_s1", out_channels=32, kernel_size=1, stride=1, padding=0,
             cc_1x1=2, binary=True, key=k_p3),
    ]

    for c in cases:
        fm, b, cfg = make_conv_params(c["key"], Cin, c["out_channels"],
                                      c["cc_1x1"], c["kernel_size"], bias=True)
        out = conv2d_filtermap_forward(
            x, fm, b, in_channels=Cin, out_channels=c["out_channels"],
            channel_compression_1x1=c["cc_1x1"], kernel_size=c["kernel_size"],
            stride=c["stride"], padding=c["padding"],
            binary_filtermap=c["binary"])
        out = jax.block_until_ready(out)

        w = extract_weight(fm, cfg, Cin, c["out_channels"], c["kernel_size"],
                           binary_filtermap=c["binary"])
        ref = jax.block_until_ready(
            ref_conv2d(x, w, b, c["stride"], c["padding"]))

        assert out.shape == ref.shape, (c["name"], out.shape, ref.shape)
        a, r = np.asarray(out), np.asarray(ref)
        if not np.allclose(a, r, rtol=2e-3, atol=2e-3):
            err = float(np.max(np.abs(a - r)))
            raise AssertionError(
                f"{c['name']}: Pallas result mismatch vs reference, "
                f"max abs err {err:e}")

    print("KERNEL_OK")
</pallas_src>

<mosaic_0001>
module attributes {stable_mosaic.version = 11 : i64} {
  func.func @_conv_kxk_bias_kernel(%arg0: i32, %arg1: memref<1x18x18x128xbf16, #tpu.memory_space<vmem>>, %arg2: memref<3x384x128xbf16, #tpu.memory_space<vmem>>, %arg3: memref<1x128xf32, #tpu.memory_space<vmem>>, %arg4: memref<1x256x128xf32, #tpu.memory_space<vmem>>, %arg5: memref<256x128xf32, #tpu.memory_space<vmem>>) attributes {dimension_semantics = [#tpu.dimension_semantics<parallel>], iteration_bounds = array<i64: 2>, scalar_prefetch = 0 : i64, scratch_operands = 1 : i64, tpu.core_type = #tpu.core_type<tc>, window_params = [{transform_indices = @transform_0, window_bounds = array<i64: 1, 18, 18, 128>}, {pipeline_mode = #tpu.pipeline_mode<synchronous>, transform_indices = @transform_1, window_bounds = array<i64: 3, 384, 128>}, {pipeline_mode = #tpu.pipeline_mode<synchronous>, transform_indices = @transform_2, window_bounds = array<i64: 1, 128>}, {transform_indices = @transform_3, window_bounds = array<i64: 1, 256, 128>}]} {
    %c0 = arith.constant 0 : index
    %c0_0 = arith.constant 0 : index
    %0 = vector.load %arg3[%c0, %c0_0] : memref<1x128xf32, #tpu.memory_space<vmem>>, vector<1x128xf32>
    %1 = vector.shape_cast %0 : vector<1x128xf32> to vector<1x128xf32>
    %2 = vector.broadcast %1 : vector<1x128xf32> to vector<256x128xf32>
    %c0_1 = arith.constant 0 : index
    %c0_2 = arith.constant 0 : index
    %3 = vector.load %arg5[%c0_1, %c0_2] : memref<256x128xf32, #tpu.memory_space<vmem>>, vector<256x128xf32>
    tpu.vector_store %arg5[%c0_1, %c0_2], %2 {strides = array<i32>} : memref<256x128xf32, #tpu.memory_space<vmem>>, vector<256x128xf32>,
    %c0_3 = arith.constant 0 : index
    %c0_4 = arith.constant 0 : index
    %c0_5 = arith.constant 0 : index
    %c0_6 = arith.constant 0 : index
    %4 = vector.load %arg1[%c0_3, %c0_4, %c0_5, %c0_6] : memref<1x18x18x128xbf16, #tpu.memory_space<vmem>>, vector<1x18x18x128xbf16>
    %5 = vector.shape_cast %4 : vector<1x18x18x128xbf16> to vector<18x18x128xbf16>
    %6 = arith.extf %5 : vector<18x18x128xbf16> to vector<18x18x128xf32>
    %7 = vector.extract_strided_slice %6 {offsets = [0, 0, 0], sizes = [16, 18, 128], strides = [1, 1, 1]} : vector<18x18x128xf32> to vector<16x18x128xf32>
    %8 = vector.extract_strided_slice %7 {offsets = [0, 0, 0], sizes = [16, 16, 128], strides = [1, 1, 1]} : vector<16x18x128xf32> to vector<16x16x128xf32>
    %9 = vector.extract_strided_slice %7 {offsets = [0, 1, 0], sizes = [16, 16, 128], strides = [1, 1, 1]} : vector<16x18x128xf32> to vector<16x16x128xf32>
    %10 = vector.extract_strided_slice %7 {offsets = [0, 2, 0], sizes = [16, 16, 128], strides = [1, 1, 1]} : vector<16x18x128xf32> to vector<16x16x128xf32>
    %11 = tpu.concatenate %8, %9, %10 in 2 : vector<16x16x128xf32>, vector<16x16x128xf32>, vector<16x16x128xf32> -> vector<16x16x384xf32>
    %12 = vector.shape_cast %11 : vector<16x16x384xf32> to vector<256x384xf32>
    %c0_7 = arith.constant 0 : index
    %c0_8 = arith.constant 0 : index
    %13 = vector.load %arg5[%c0_7, %c0_8] : memref<256x128xf32, #tpu.memory_space<vmem>>, vector<256x128xf32>
    %14 = arith.truncf %12 : vector<256x384xf32> to vector<256x384xbf16>
    %c0_9 = arith.constant 0 : index
    %c0_10 = arith.constant 0 : index
    %c0_11 = arith.constant 0 : index
    %15 = vector.load %arg2[%c0_9, %c0_10, %c0_11] : memref<3x384x128xbf16, #tpu.memory_space<vmem>>, vector<1x384x128xbf16>
    %16 = vector.shape_cast %15 : vector<1x384x128xbf16> to vector<384x128xbf16>
    %cst = arith.constant dense<0.000000e+00> : vector<256x128xf32>
    %17 = tpu.matmul %14, %16, %cst {dimension_numbers = #tpu.dot_dimension_numbers<[1], [0], [0], [1], [0, 0, 1, 1], [], []>} : vector<256x384xbf16>, vector<384x128xbf16>, vector<256x128xf32> -> vector<256x128xf32>
    %18 = arith.addf %13, %17 : vector<256x128xf32>
    %c0_12 = arith.constant 0 : index
    %c0_13 = arith.constant 0 : index
    %19 = vector.load %arg5[%c0_12, %c0_13] : memref<256x128xf32, #tpu.memory_space<vmem>>, vector<256x128xf32>
    tpu.vector_store %arg5[%c0_12, %c0_13], %18 {strides = array<i32>} : memref<256x128xf32, #tpu.memory_space<vmem>>, vector<256x128xf32>,
    %20 = vector.extract_strided_slice %6 {offsets = [1, 0, 0], sizes = [16, 18, 128], strides = [1, 1, 1]} : vector<18x18x128xf32> to vector<16x18x128xf32>
    %21 = vector.extract_strided_slice %20 {offsets = [0, 0, 0], sizes = [16, 16, 128], strides = [1, 1, 1]} : vector<16x18x128xf32> to vector<16x16x128xf32>
    %22 = vector.extract_strided_slice %20 {offsets = [0, 1, 0], sizes = [16, 16, 128], strides = [1, 1, 1]} : vector<16x18x128xf32> to vector<16x16x128xf32>
    %23 = vector.extract_strided_slice %20 {offsets = [0, 2, 0], sizes = [16, 16, 128], strides = [1, 1, 1]} : vector<16x18x128xf32> to vector<16x16x128xf32>
    %24 = tpu.concatenate %21, %22, %23 in 2 : vector<16x16x128xf32>, vector<16x16x128xf32>, vector<16x16x128xf32> -> vector<16x16x384xf32>
    %25 = vector.shape_cast %24 : vector<16x16x384xf32> to vector<256x384xf32>
    %c0_14 = arith.constant 0 : index
    %c0_15 = arith.constant 0 : index
    %26 = vector.load %arg5[%c0_14, %c0_15] : memref<256x128xf32, #tpu.memory_space<vmem>>, vector<256x128xf32>
    %27 = arith.truncf %25 : vector<256x384xf32> to vector<256x384xbf16>
    %c1 = arith.constant 1 : index
    %c0_16 = arith.constant 0 : index
    %c0_17 = arith.constant 0 : index
    %28 = vector.load %arg2[%c1, %c0_16, %c0_17] : memref<3x384x128xbf16, #tpu.memory_space<vmem>>, vector<1x384x128xbf16>
    %29 = vector.shape_cast %28 : vector<1x384x128xbf16> to vector<384x128xbf16>
    %cst_18 = arith.constant dense<0.000000e+00> : vector<256x128xf32>
    %30 = tpu.matmul %27, %29, %cst_18 {dimension_numbers = #tpu.dot_dimension_numbers<[1], [0], [0], [1], [0, 0, 1, 1], [], []>} : vector<256x384xbf16>, vector<384x128xbf16>, vector<256x128xf32> -> vector<256x128xf32>
    %31 = arith.addf %26, %30 : vector<256x128xf32>
    %c0_19 = arith.constant 0 : index
    %c0_20 = arith.constant 0 : index
    %32 = vector.load %arg5[%c0_19, %c0_20] : memref<256x128xf32, #tpu.memory_space<vmem>>, vector<256x128xf32>
    tpu.vector_store %arg5[%c0_19, %c0_20], %31 {strides = array<i32>} : memref<256x128xf32, #tpu.memory_space<vmem>>, vector<256x128xf32>,
    %33 = vector.extract_strided_slice %6 {offsets = [2, 0, 0], sizes = [16, 18, 128], strides = [1, 1, 1]} : vector<18x18x128xf32> to vector<16x18x128xf32>
    %34 = vector.extract_strided_slice %33 {offsets = [0, 0, 0], sizes = [16, 16, 128], strides = [1, 1, 1]} : vector<16x18x128xf32> to vector<16x16x128xf32>
    %35 = vector.extract_strided_slice %33 {offsets = [0, 1, 0], sizes = [16, 16, 128], strides = [1, 1, 1]} : vector<16x18x128xf32> to vector<16x16x128xf32>
    %36 = vector.extract_strided_slice %33 {offsets = [0, 2, 0], sizes = [16, 16, 128], strides = [1, 1, 1]} : vector<16x18x128xf32> to vector<16x16x128xf32>
    %37 = tpu.concatenate %34, %35, %36 in 2 : vector<16x16x128xf32>, vector<16x16x128xf32>, vector<16x16x128xf32> -> vector<16x16x384xf32>
    %38 = vector.shape_cast %37 : vector<16x16x384xf32> to vector<256x384xf32>
    %c0_21 = arith.constant 0 : index
    %c0_22 = arith.constant 0 : index
    %39 = vector.load %arg5[%c0_21, %c0_22] : memref<256x128xf32, #tpu.memory_space<vmem>>, vector<256x128xf32>
    %40 = arith.truncf %38 : vector<256x384xf32> to vector<256x384xbf16>
    %c2 = arith.constant 2 : index
    %c0_23 = arith.constant 0 : index
    %c0_24 = arith.constant 0 : index
    %41 = vector.load %arg2[%c2, %c0_23, %c0_24] : memref<3x384x128xbf16, #tpu.memory_space<vmem>>, vector<1x384x128xbf16>
    %42 = vector.shape_cast %41 : vector<1x384x128xbf16> to vector<384x128xbf16>
    %cst_25 = arith.constant dense<0.000000e+00> : vector<256x128xf32>
    %43 = tpu.matmul %40, %42, %cst_25 {dimension_numbers = #tpu.dot_dimension_numbers<[1], [0], [0], [1], [0, 0, 1, 1], [], []>} : vector<256x384xbf16>, vector<384x128xbf16>, vector<256x128xf32> -> vector<256x128xf32>
    %44 = arith.addf %39, %43 : vector<256x128xf32>
    %c0_26 = arith.constant 0 : index
    %c0_27 = arith.constant 0 : index
    %45 = vector.load %arg5[%c0_26, %c0_27] : memref<256x128xf32, #tpu.memory_space<vmem>>, vector<256x128xf32>
    tpu.vector_store %arg5[%c0_26, %c0_27], %44 {strides = array<i32>} : memref<256x128xf32, #tpu.memory_space<vmem>>, vector<256x128xf32>,
    %c0_28 = arith.constant 0 : index
    %c0_29 = arith.constant 0 : index
    %46 = vector.load %arg5[%c0_28, %c0_29] : memref<256x128xf32, #tpu.memory_space<vmem>>, vector<256x128xf32>
    %c0_30 = arith.constant 0 : index
    %c0_31 = arith.constant 0 : index
    %c0_32 = arith.constant 0 : index
    %47 = vector.load %arg4[%c0_30, %c0_31, %c0_32] : memref<1x256x128xf32, #tpu.memory_space<vmem>>, vector<1x256x128xf32>
    %48 = vector.shape_cast %47 : vector<1x256x128xf32> to vector<256x128xf32>
    %49 = vector.shape_cast %46 : vector<256x128xf32> to vector<1x256x128xf32>
    tpu.vector_store %arg4[%c0_30, %c0_31, %c0_32], %49 {strides = array<i32>} : memref<1x256x128xf32, #tpu.memory_space<vmem>>, vector<1x256x128xf32>,
    return
  }
  func.func @transform_0(%arg0: i32) -> (i32, i32, i32, i32) {
    %c0_i32 = arith.constant 0 : i32
    %c0_i32_0 = arith.constant 0 : i32
    %c0_i32_1 = arith.constant 0 : i32
    %c0_i32_2 = arith.constant 0 : i32
    return %arg0, %c0_i32, %c0_i32_0, %c0_i32_1 : i32, i32, i32, i32
  }
  func.func @transform_1(%arg0: i32) -> (i32, i32, i32) {
    %c0_i32 = arith.constant 0 : i32
    %c0_i32_0 = arith.constant 0 : i32
    %c0_i32_1 = arith.constant 0 : i32
    %c0_i32_2 = arith.constant 0 : i32
    return %c0_i32, %c0_i32_0, %c0_i32_1 : i32, i32, i32
  }
  func.func @transform_2(%arg0: i32) -> (i32, i32) {
    %c0_i32 = arith.constant 0 : i32
    %c0_i32_0 = arith.constant 0 : i32
    %c0_i32_1 = arith.constant 0 : i32
    return %c0_i32, %c0_i32_0 : i32, i32
  }
  func.func @transform_3(%arg0: i32) -> (i32, i32, i32) {
    %c0_i32 = arith.constant 0 : i32
    %c0_i32_0 = arith.constant 0 : i32
    %c0_i32_1 = arith.constant 0 : i32
    return %arg0, %c0_i32, %c0_i32_0 : i32, i32, i32
  }
}

</mosaic_0001>

<llo_original>
// kernel: tpu_custom_call.1
$region0: #{tpu_custom_call.1}
  #allocation0 [shape = 'u32[]', space=smem, size = 0x4, offset = 0x4, fixed_abs, tag = 'smem constant byte address 0x4 - core index']
  #allocation1 [shape = 'u32[144,128]{1,0:T(1,128)}', space=vmem, size = 0x12000, scoped, tag = 'internal scratch']
  #allocation2 [shape = 'f32[256,128]{1,0:T(8,128)}', space=vmem, size = 0x20000, scoped, tag = 'scratch operand']
  %s0 = inlined_call_operand.vmem [shape: bf16[2,18,18,128], index: 0, kind: input, shape index: {}]
  %s1 = inlined_call_operand.vmem [shape: bf16[3,384,128], index: 1, kind: input, shape index: {}]
  %s2 = inlined_call_operand.vmem [shape: f32[1,128], index: 2, kind: input, shape index: {}]
  %s3 = inlined_call_operand.hbm [shape: f32[2,256,128], index: 3, kind: output, shape index: {}]
  %s4 = sld [smem:[#allocation0]]
  $region45: #{tpu_custom_call.1} parent=0
    _
  %s6 = ssub.s32 1, %s4
  %s7 = scalar_select 0, %s6, %s4
  $region1: #{tpu_custom_call.1} parent=0
    #allocation3 [shape = 'u8[262144]{0}', space=vmem, size = 0x40000, scoped, tag = 'output window, operand 0']
    #allocation4 [shape = 's32[2]{0}', space=sflag, size = 0x8, scoped, tag = 'scoped memory for tpu_custom_call.1']
    %8 = vsyncpa [#allocation4], 0
    %s9 = scalar_lea.sflag [#allocation4], 1
    %10 = vsyncpa %s9, 0
    loop: start=0, step=1, limit=4
    $region2: #{tpu_custom_call.1} parent=1 // loop_pre_header
      _
    $region3: #{tpu_custom_call.1} parent=1 // loop_header
      %s12 = sphi 0, %s16
      %p13 = scmp.ge.s32.totalorder %s12, 4
      %s22 = sphi 0, %s24
      %s25 = sphi 0, %s22
      %s26 = sphi 0, %s25
      %s42 = sphi 0, %s26
      %s46 = sphi 0, %s46
      %s48 = sphi 0, %s46
      %s49 = sphi 0, %s48
      %s63 = sphi 0, %s49
      %s67 = sphi 0, %s67
      %s69 = sphi 0, %s67
      %s70 = sphi 0, %s69
      %s84 = sphi 0, %s70
      %s90 = sphi 0, %s92
      %s93 = sphi 0, %s90
      %s94 = sphi 0, %s93
      %s110 = sphi 0, %s94
    $region4: #{tpu_custom_call.1} parent=1 // loop_header_branch
      %15 = sbr.rel (%p13) target = $region8
    $region5: #{tpu_custom_call.1} parent=1 // loop_body
      %s17 = ssub.s32 %s12, 1
      %s18 = ssub.s32 %s12, 2
      %s19 = sadd.s32 %s12, 1
      %s20 = ssub.s32 %s12, %s19
      %p21 = scmp.eq.s32.totalorder %s20, 0
      %s23 = sadd.s32 %s22, 1
      %s24 = scalar_select %p21, %s22, %s23
      %p27 = pneg %p21
      %p28 = scmp.eq.s32.totalorder %s12, 1
      %p29 = por %p27, %p28
      %p30 = scmp.ne.s32.totalorder %s22, %s25
      %p31 = scmp.eq.s32.totalorder %s12, 0
      %p32 = por %p30, %p31
      %p33 = scmp.ne.s32.totalorder %s22, %s25
      %p34 = scmp.eq.s32.totalorder %s17, 1
      %p35 = por %p33, %p34
      %p36 = scmp.ne.s32.totalorder %s25, %s26
      %p37 = scmp.eq.s32.totalorder %s17, 0
      %p38 = por %p36, %p37
      %p39 = scmp.ne.s32.totalorder %s25, %s26
      %p40 = scmp.eq.s32.totalorder %s18, 1
      %p41 = por %p39, %p40
      %p43 = scmp.ne.s32.totalorder %s26, %s42
      %p44 = scmp.eq.s32.totalorder %s18, 0
      %p45 = por %p43, %p44
      %s47 = sadd.s32 %s46, 1
      %p50 = scmp.eq.s32.totalorder %s12, 1
      %p51 = scmp.ne.s32.totalorder %s46, %s48
      %p52 = scmp.eq.s32.totalorder %s12, 0
      %p53 = por %p51, %p52
      %p54 = scmp.ne.s32.totalorder %s46, %s48
      %p55 = scmp.eq.s32.totalorder %s17, 1
      %p56 = por %p54, %p55
      %p57 = scmp.ne.s32.totalorder %s48, %s49
      %p58 = scmp.eq.s32.totalorder %s17, 0
      %p59 = por %p57, %p58
      %p60 = scmp.ne.s32.totalorder %s48, %s49
      %p61 = scmp.eq.s32.totalorder %s18, 1
      %p62 = por %p60, %p61
      %p64 = scmp.ne.s32.totalorder %s49, %s63
      %p65 = scmp.eq.s32.totalorder %s18, 0
      %p66 = por %p64, %p65
      %s68 = sadd.s32 %s67, 1
      %p71 = scmp.eq.s32.totalorder %s12, 1
      %p72 = scmp.ne.s32.totalorder %s67, %s69
      %p73 = scmp.eq.s32.totalorder %s12, 0
      %p74 = por %p72, %p73
      %p75 = scmp.ne.s32.totalorder %s67, %s69
      %p76 = scmp.eq.s32.totalorder %s17, 1
      %p77 = por %p75, %p76
      %p78 = scmp.ne.s32.totalorder %s69, %s70
      %p79 = scmp.eq.s32.totalorder %s17, 0
      %p80 = por %p78, %p79
      %p81 = scmp.ne.s32.totalorder %s69, %s70
      %p82 = scmp.eq.s32.totalorder %s18, 1
      %p83 = por %p81, %p82
      %p85 = scmp.ne.s32.totalorder %s70, %s84
      %p86 = scmp.eq.s32.totalorder %s18, 0
      %p87 = por %p85, %p86
      %s88 = ssub.s32 %s12, %s19
      %p89 = scmp.eq.s32.totalorder %s88, 0
      %s91 = sadd.s32 %s90, 1
      %s92 = scalar_select %p89, %s90, %s91
      %p95 = pneg %p89
      %p96 = scmp.eq.s32.totalorder %s12, 1
      %p97 = por %p95, %p96
      %p98 = scmp.ne.s32.totalorder %s90, %s93
      %p99 = scmp.eq.s32.totalorder %s12, 0
      %p100 = por %p98, %p99
      %p101 = scmp.ne.s32.totalorder %s90, %s93
      %p102 = scmp.eq.s32.totalorder %s17, 1
      %p103 = por %p101, %p102
      %p104 = scmp.ne.s32.totalorder %s93, %s94
      %p105 = scmp.eq.s32.totalorder %s17, 0
      %p106 = por %p104, %p105
      %p107 = scmp.ne.s32.totalorder %s93, %s94
      %p108 = scmp.eq.s32.totalorder %s18, 1
      %p109 = por %p107, %p108
      %p111 = scmp.ne.s32.totalorder %s94, %s110
      %p112 = scmp.eq.s32.totalorder %s18, 0
      %p113 = por %p111, %p112
      %p114 = scmp.le.s32.totalorder 1, %s12
      %p115 = scmp.lt.s32.totalorder %s12, 3
      %p116 = pnand %p114, %p115
      %p117 = pneg %p116
      // Predicated region
      $region9: #{tpu_custom_call.1} parent=5 // pred_check
        _
      $region10: #{tpu_custom_call.1} parent=5 // pred_check_branch
        %119 = sbr.rel (%p116) target = $region12
      $region11: #{tpu_custom_call.1} parent=5 // pred_region
        %s120 = ssub.s32 %s12, 1
        // Predicated region
        $region13: #{tpu_custom_call.1} parent=11 // pred_check
          %p121 = pneg %p59
        $region14: #{tpu_custom_call.1} parent=11 // pred_check_branch
          %123 = sbr.rel (%p121) target = $region16
        $region15: #{tpu_custom_call.1} parent=11 // pred_region
          _
        $region16: #{tpu_custom_call.1} parent=11 // pred_fallthru
          _
        // Predicated region
        $region17: #{tpu_custom_call.1} parent=11 // pred_check
          %p124 = pneg %p80
        $region18: #{tpu_custom_call.1} parent=11 // pred_check_branch
          %126 = sbr.rel (%p124) target = $region20
        $region19: #{tpu_custom_call.1} parent=11 // pred_region
          _
        $region20: #{tpu_custom_call.1} parent=11 // pred_fallthru
          _
      $region12: #{tpu_custom_call.1} parent=5 // pred_fallthru
        _
      %p127 = scmp.lt.s32.totalorder %s12, 2
      // Predicated region
      $region21: #{tpu_custom_call.1} parent=5 // pred_check
        %p128 = pneg %p127
      $region22: #{tpu_custom_call.1} parent=5 // pred_check_branch
        %130 = sbr.rel (%p128) target = $region24
      $region23: #{tpu_custom_call.1} parent=5 // pred_region
        // Predicated region
        $region25: #{tpu_custom_call.1} parent=23 // pred_check
          %p131 = pneg %p32
        $region26: #{tpu_custom_call.1} parent=23 // pred_check_branch
          %133 = sbr.rel (%p131) target = $region28
        $region27: #{tpu_custom_call.1} parent=23 // pred_region
          %p134 = scmp.lt.s32.totalorder %s12, 1
          %s135 = scalar_select %p134, %s12, 1
          %s136 = smul.addr %s135, 54
          %s137 = smul.addr %s136, 4
          %s138 = scalar_lea.vmem %s0, %s137
        $region28: #{tpu_custom_call.1} parent=23 // pred_fallthru
          _
      $region24: #{tpu_custom_call.1} parent=5 // pred_fallthru
        _
      %p139 = scmp.le.s32.totalorder 1, %s12
      %p140 = scmp.lt.s32.totalorder %s12, 3
      %p141 = pnand %p139, %p140
      %p142 = pneg %p141
      // Predicated region
      $region29: #{tpu_custom_call.1} parent=5 // pred_check
        _
      $region30: #{tpu_custom_call.1} parent=5 // pred_check_branch
        %144 = sbr.rel (%p141) target = $region32
      $region31: #{tpu_custom_call.1} parent=5 // pred_region
        %s145 = ssub.s32 %s12, 1
        %p146 = scmp.lt.s32.totalorder %s17, 1
        %s147 = scalar_select %p146, %s17, 1
        %s148 = smul.addr %s147, 54
        %s149 = smul.addr %s148, 4
        %s150 = scalar_lea.vmem %s0, %s149
        %p151 = pneg %p38
        %p152 = pneg %p35
        %p153 = pneg %p59
        %p154 = pneg %p56
        %p155 = pneg %p80
        %p156 = pneg %p77
        %p157 = pneg %p106
        %p158 = pneg %p103
        %s159 = sand.u32 %s93, 1
        %s160 = scalar_lea.sflag [#allocation4], %s159
        %s161 = sand.u32 %s93, 1
        %s162 = smul.addr %s161, 256
        %s163 = scalar_lea.vmem [#allocation3], %s162
        %p164 = scmp.lt.s32.totalorder %s17, 1
        %s165 = scalar_select %p164, %s17, 1
        %s166 = smul.addr %s165, 54
        %s167 = smul.addr %s166, 4
        %s168 = scalar_lea.vmem %s0, %s167
        %v170 = vld [vmem:[%s2] sm:$0x1]
        %v172 = vlaneseq
        %v173 = vshrl.u32 %v172, 7
        %v174 = vsub.s32 0, %v173
        %v175 = vrot.slane %v170, %v174
        %177 = vst [vmem:[#allocation2] sm:$0xff] %v175
        %178 = vst [vmem:[#allocation2 + $0x8] sm:$0xff] %v175
        %179 = vst [vmem:[#allocation2 + $0x10] sm:$0xff] %v175
        %180 = vst [vmem:[#allocation2 + $0x18] sm:$0xff] %v175
        %181 = vst [vmem:[#allocation2 + $0x20] sm:$0xff] %v175
        %182 = vst [vmem:[#allocation2 + $0x28] sm:$0xff] %v175
        %183 = vst [vmem:[#allocation2 + $0x30] sm:$0xff] %v175
        %184 = vst [vmem:[#allocation2 + $0x38] sm:$0xff] %v175
        %185 = vst [vmem:[#allocation2 + $0x40] sm:$0xff] %v175
        %186 = vst [vmem:[#allocation2 + $0x48] sm:$0xff] %v175
        %187 = vst [vmem:[#allocation2 + $0x50] sm:$0xff] %v175
        %188 = vst [vmem:[#allocation2 + $0x58] sm:$0xff] %v175
        %189 = vst [vmem:[#allocation2 + $0x60] sm:$0xff] %v175
        %190 = vst [vmem:[#allocation2 + $0x68] sm:$0xff] %v175
        %191 = vst [vmem:[#allocation2 + $0x70] sm:$0xff] %v175
        %192 = vst [vmem:[#allocation2 + $0x78] sm:$0xff] %v175
        %193 = vst [vmem:[#allocation2 + $0x80] sm:$0xff] %v175
        %194 = vst [vmem:[#allocation2 + $0x88] sm:$0xff] %v175
        %195 = vst [vmem:[#allocation2 + $0x90] sm:$0xff] %v175
        %196 = vst [vmem:[#allocation2 + $0x98] sm:$0xff] %v175
        %197 = vst [vmem:[#allocation2 + $0xa0] sm:$0xff] %v175
        %198 = vst [vmem:[#allocation2 + $0xa8] sm:$0xff] %v175
        %199 = vst [vmem:[#allocation2 + $0xb0] sm:$0xff] %v175
        %200 = vst [vmem:[#allocation2 + $0xb8] sm:$0xff] %v175
        %201 = vst [vmem:[#allocation2 + $0xc0] sm:$0xff] %v175
        %202 = vst [vmem:[#allocation2 + $0xc8] sm:$0xff] %v175
        %203 = vst [vmem:[#allocation2 + $0xd0] sm:$0xff] %v175
        %204 = vst [vmem:[#allocation2 + $0xd8] sm:$0xff] %v175
        %205 = vst [vmem:[#allocation2 + $0xe0] sm:$0xff] %v175
        %206 = vst [vmem:[#allocation2 + $0xe8] sm:$0xff] %v175
        %207 = vst [vmem:[#allocation2 + $0xf0] sm:$0xff] %v175
        %208 = vst [vmem:[#allocation2 + $0xf8] sm:$0xff] %v175
        %v209 = vld [vmem:[%s168] sm:$0xf]
        %v210 = vld [vmem:[%s168 + $0x4] sm:$0xf]
        %v211 = vld [vmem:[%s168 + $0x8] sm:$0x1]
        %v212 = vld [vmem:[%s168 + $0xc] sm:$0xf]
        %v213 = vld [vmem:[%s168 + $0x10] sm:$0xf]
        %v214 = vld [vmem:[%s168 + $0x14] sm:$0x1]
        %v215 = vld [vmem:[%s168 + $0x18] sm:$0xf]
        %v216 = vld [vmem:[%s168 + $0x1c] sm:$0xf]
        %v217 = vld [vmem:[%s168 + $0x20] sm:$0x1]
        %v218 = vld [vmem:[%s168 + $0x24] sm:$0xf]
        %v219 = vld [vmem:[%s168 + $0x28] sm:$0xf]
        %v220 = vld [vmem:[%s168 + $0x2c] sm:$0x1]
        %v221 = vld [vmem:[%s168 + $0x30] sm:$0xf]
        %v222 = vld [vmem:[%s168 + $0x34] sm:$0xf]
        %v223 = vld [vmem:[%s168 + $0x38] sm:$0x1]
        %v224 = vld [vmem:[%s168 + $0x3c] sm:$0xf]
        %v225 = vld [vmem:[%s168 + $0x40] sm:$0xf]
        %v226 = vld [vmem:[%s168 + $0x44] sm:$0x1]
        %v227 = vld [vmem:[%s168 + $0x48] sm:$0xf]
        %v228 = vld [vmem:[%s168 + $0x4c] sm:$0xf]
        %v229 = vld [vmem:[%s168 + $0x50] sm:$0x1]
        %v230 = vld [vmem:[%s168 + $0x54] sm:$0xf]
        %v231 = vld [vmem:[%s168 + $0x58] sm:$0xf]
        %v232 = vld [vmem:[%s168 + $0x5c] sm:$0x1]
        %v233 = vld [vmem:[%s168 + $0x60] sm:$0xf]
        %v234 = vld [vmem:[%s168 + $0x64] sm:$0xf]
        %v235 = vld [vmem:[%s168 + $0x68] sm:$0x1]
        %v236 = vld [vmem:[%s168 + $0x6c] sm:$0xf]
        %v237 = vld [vmem:[%s168 + $0x70] sm:$0xf]
        %v238 = vld [vmem:[%s168 + $0x74] sm:$0x1]
        %v239 = vld [vmem:[%s168 + $0x78] sm:$0xf]
        %v240 = vld [vmem:[%s168 + $0x7c] sm:$0xf]
        %v241 = vld [vmem:[%s168 + $0x80] sm:$0x1]
        %v242 = vld [vmem:[%s168 + $0x84] sm:$0xf]
        %v243 = vld [vmem:[%s168 + $0x88] sm:$0xf]
        %v244 = vld [vmem:[%s168 + $0x8c] sm:$0x1]
        %v245 = vld [vmem:[%s168 + $0x90] sm:$0xf]
        %v246 = vld [vmem:[%s168 + $0x94] sm:$0xf]
        %v247 = vld [vmem:[%s168 + $0x98] sm:$0x1]
        %v248 = vld [vmem:[%s168 + $0x9c] sm:$0xf]
        %v249 = vld [vmem:[%s168 + $0xa0] sm:$0xf]
        %v250 = vld [vmem:[%s168 + $0xa4] sm:$0x1]
        %v251 = vld [vmem:[%s168 + $0xa8] sm:$0xf]
        %v252 = vld [vmem:[%s168 + $0xac] sm:$0xf]
        %v253 = vld [vmem:[%s168 + $0xb0] sm:$0x1]
        %v254 = vld [vmem:[%s168 + $0xb4] sm:$0xf]
        %v255 = vld [vmem:[%s168 + $0xb8] sm:$0xf]
        %v256 = vld [vmem:[%s168 + $0xbc] sm:$0x1]
        %v257 = vld [vmem:[%s168 + $0xc0] sm:$0xf]
        %v258 = vld [vmem:[%s168 + $0xc4] sm:$0xf]
        %v259 = vld [vmem:[%s168 + $0xc8] sm:$0x1]
        %v260 = vld [vmem:[%s168 + $0xcc] sm:$0xf]
        %v261 = vld [vmem:[%s168 + $0xd0] sm:$0xf]
        %v262 = vld [vmem:[%s168 + $0xd4] sm:$0x1]
        %v263 = vunpack.c.l.bf16 %v209
        %v264 = vunpack.c.l.bf16 %v210
        %v265 = vunpack.c.l.bf16 %v211
        %v266 = vunpack.c.l.bf16 %v212
        %v267 = vunpack.c.l.bf16 %v213
        %v268 = vunpack.c.l.bf16 %v214
        %v269 = vunpack.c.l.bf16 %v215
        %v270 = vunpack.c.l.bf16 %v216
        %v271 = vunpack.c.l.bf16 %v217
        %v272 = vunpack.c.l.bf16 %v218
        %v273 = vunpack.c.l.bf16 %v219
        %v274 = vunpack.c.l.bf16 %v220
        %v275 = vunpack.c.l.bf16 %v221
        %v276 = vunpack.c.l.bf16 %v222
        %v277 = vunpack.c.l.bf16 %v223
        %v278 = vunpack.c.l.bf16 %v224
        %v279 = vunpack.c.l.bf16 %v225
        %v280 = vunpack.c.l.bf16 %v226
        %v281 = vunpack.c.l.bf16 %v227
        %v282 = vunpack.c.l.bf16 %v228
        %v283 = vunpack.c.l.bf16 %v229
        %v284 = vunpack.c.l.bf16 %v230
        %v285 = vunpack.c.l.bf16 %v231
        %v286 = vunpack.c.l.bf16 %v232
        %v287 = vunpack.c.l.bf16 %v233
        %v288 = vunpack.c.l.bf16 %v234
        %v289 = vunpack.c.l.bf16 %v235
        %v290 = vunpack.c.l.bf16 %v236
        %v291 = vunpack.c.l.bf16 %v237
        %v292 = vunpack.c.l.bf16 %v238
        %v293 = vunpack.c.l.bf16 %v239
        %v294 = vunpack.c.l.bf16 %v240
        %v295 = vunpack.c.l.bf16 %v241
        %v296 = vunpack.c.l.bf16 %v242
        %v297 = vunpack.c.l.bf16 %v243
        %v298 = vunpack.c.l.bf16 %v244
        %v299 = vunpack.c.l.bf16 %v245
        %v300 = vunpack.c.l.bf16 %v246
        %v301 = vunpack.c.l.bf16 %v247
        %v302 = vunpack.c.l.bf16 %v248
        %v303 = vunpack.c.l.bf16 %v249
        %v304 = vunpack.c.l.bf16 %v250
        %v305 = vunpack.c.l.bf16 %v251
        %v306 = vunpack.c.l.bf16 %v252
        %v307 = vunpack.c.l.bf16 %v253
        %v308 = vunpack.c.l.bf16 %v254
        %v309 = vunpack.c.l.bf16 %v255
        %v310 = vunpack.c.l.bf16 %v256
        %v311 = vunpack.c.l.bf16 %v257
        %v312 = vunpack.c.l.bf16 %v258
        %v313 = vunpack.c.l.bf16 %v259
        %v314 = vunpack.c.l.bf16 %v260
        %v315 = vunpack.c.l.bf16 %v261
        %v316 = vunpack.c.l.bf16 %v262
        %vm365 = vcmask 1046528
        %v366 = vrot.slane %v263, 1
        %v367 = vrot.slane %v264, 1
        %v368 = vsel %vm365, %v366, %v367
        %v369 = vrot.slane %v265, 1
        %v370 = vsel %vm365, %v367, %v369
        %v371 = vrot.slane %v266, 1
        %v372 = vrot.slane %v267, 1
        %v373 = vsel %vm365, %v371, %v372
        %v374 = vrot.slane %v268, 1
        %v375 = vsel %vm365, %v372, %v374
        %v376 = vrot.slane %v269, 1
        %v377 = vrot.slane %v270, 1
        %v378 = vsel %vm365, %v376, %v377
        %v379 = vrot.slane %v271, 1
        %v380 = vsel %vm365, %v377, %v379
        %v381 = vrot.slane %v272, 1
        %v382 = vrot.slane %v273, 1
        %v383 = vsel %vm365, %v381, %v382
        %v384 = vrot.slane %v274, 1
        %v385 = vsel %vm365, %v382, %v384
        %v386 = vrot.slane %v275, 1
        %v387 = vrot.slane %v276, 1
        %v388 = vsel %vm365, %v386, %v387
        %v389 = vrot.slane %v277, 1
        %v390 = vsel %vm365, %v387, %v389
        %v391 = vrot.slane %v278, 1
        %v392 = vrot.slane %v279, 1
        %v393 = vsel %vm365, %v391, %v392
        %v394 = vrot.slane %v280, 1
        %v395 = vsel %vm365, %v392, %v394
        %v396 = vrot.slane %v281, 1
        %v397 = vrot.slane %v282, 1
        %v398 = vsel %vm365, %v396, %v397
        %v399 = vrot.slane %v283, 1
        %v400 = vsel %vm365, %v397, %v399
        %v401 = vrot.slane %v284, 1
        %v402 = vrot.slane %v285, 1
        %v403 = vsel %vm365, %v401, %v402
        %v404 = vrot.slane %v286, 1
        %v405 = vsel %vm365, %v402, %v404
        %v406 = vrot.slane %v287, 1
        %v407 = vrot.slane %v288, 1
        %v408 = vsel %vm365, %v406, %v407
        %v409 = vrot.slane %v289, 1
        %v410 = vsel %vm365, %v407, %v409
        %v411 = vrot.slane %v290, 1
        %v412 = vrot.slane %v291, 1
        %v413 = vsel %vm365, %v411, %v412
        %v414 = vrot.slane %v292, 1
        %v415 = vsel %vm365, %v412, %v414
        %v416 = vrot.slane %v293, 1
        %v417 = vrot.slane %v294, 1
        %v418 = vsel %vm365, %v416, %v417
        %v419 = vrot.slane %v295, 1
        %v420 = vsel %vm365, %v417, %v419
        %v421 = vrot.slane %v296, 1
        %v422 = vrot.slane %v297, 1
        %v423 = vsel %vm365, %v421, %v422
        %v424 = vrot.slane %v298, 1
        %v425 = vsel %vm365, %v422, %v424
        %v426 = vrot.slane %v299, 1
        %v427 = vrot.slane %v300, 1
        %v428 = vsel %vm365, %v426, %v427
        %v429 = vrot.slane %v301, 1
        %v430 = vsel %vm365, %v427, %v429
        %v431 = vrot.slane %v302, 1
        %v432 = vrot.slane %v303, 1
        %v433 = vsel %vm365, %v431, %v432
        %v434 = vrot.slane %v304, 1
        %v435 = vsel %vm365, %v432, %v434
        %v436 = vrot.slane %v305, 1
        %v437 = vrot.slane %v306, 1
        %v438 = vsel %vm365, %v436, %v437
        %v439 = vrot.slane %v307, 1
        %v440 = vsel %vm365, %v437, %v439
        %v441 = vrot.slane %v308, 1
        %v442 = vrot.slane %v309, 1
        %v443 = vsel %vm365, %v441, %v442
        %v444 = vrot.slane %v310, 1
        %v445 = vsel %vm365, %v442, %v444
        %vm478 = vcmask 1045504
        %v479 = vrot.slane %v263, 2
        %v480 = vrot.slane %v264, 2
        %v481 = vsel %vm478, %v479, %v480
        %v482 = vrot.slane %v265, 2
        %v483 = vsel %vm478, %v480, %v482
        %v484 = vrot.slane %v266, 2
        %v485 = vrot.slane %v267, 2
        %v486 = vsel %vm478, %v484, %v485
        %v487 = vrot.slane %v268, 2
        %v488 = vsel %vm478, %v485, %v487
        %v489 = vrot.slane %v269, 2
        %v490 = vrot.slane %v270, 2
        %v491 = vsel %vm478, %v489, %v490
        %v492 = vrot.slane %v271, 2
        %v493 = vsel %vm478, %v490, %v492
        %v494 = vrot.slane %v272, 2
        %v495 = vrot.slane %v273, 2
        %v496 = vsel %vm478, %v494, %v495
        %v497 = vrot.slane %v274, 2
        %v498 = vsel %vm478, %v495, %v497
        %v499 = vrot.slane %v275, 2
        %v500 = vrot.slane %v276, 2
        %v501 = vsel %vm478, %v499, %v500
        %v502 = vrot.slane %v277, 2
        %v503 = vsel %vm478, %v500, %v502
        %v504 = vrot.slane %v278, 2
        %v505 = vrot.slane %v279, 2
        %v506 = vsel %vm478, %v504, %v505
        %v507 = vrot.slane %v280, 2
        %v508 = vsel %vm478, %v505, %v507
        %v509 = vrot.slane %v281, 2
        %v510 = vrot.slane %v282, 2
        %v511 = vsel %vm478, %v509, %v510
        %v512 = vrot.slane %v283, 2
        %v513 = vsel %vm478, %v510, %v512
        %v514 = vrot.slane %v284, 2
        %v515 = vrot.slane %v285, 2
        %v516 = vsel %vm478, %v514, %v515
        %v517 = vrot.slane %v286, 2
        %v518 = vsel %vm478, %v515, %v517
        %v519 = vrot.slane %v287, 2
        %v520 = vrot.slane %v288, 2
        %v521 = vsel %vm478, %v519, %v520
        %v522 = vrot.slane %v289, 2
        %v523 = vsel %vm478, %v520, %v522
        %v524 = vrot.slane %v290, 2
        %v525 = vrot.slane %v291, 2
        %v526 = vsel %vm478, %v524, %v525
        %v527 = vrot.slane %v292, 2
        %v528 = vsel %vm478, %v525, %v527
        %v529 = vrot.slane %v293, 2
        %v530 = vrot.slane %v294, 2
        %v531 = vsel %vm478, %v529, %v530
        %v532 = vrot.slane %v295, 2
        %v533 = vsel %vm478, %v530, %v532
        %v534 = vrot.slane %v296, 2
        %v535 = vrot.slane %v297, 2
        %v536 = vsel %vm478, %v534, %v535
        %v537 = vrot.slane %v298, 2
        %v538 = vsel %vm478, %v535, %v537
        %v539 = vrot.slane %v299, 2
        %v540 = vrot.slane %v300, 2
        %v541 = vsel %vm478, %v539, %v540
        %v542 = vrot.slane %v301, 2
        %v543 = vsel %vm478, %v540, %v542
        %v544 = vrot.slane %v302, 2
        %v545 = vrot.slane %v303, 2
        %v546 = vsel %vm478, %v544, %v545
        %v547 = vrot.slane %v304, 2
        %v548 = vsel %vm478, %v545, %v547
        %v549 = vrot.slane %v305, 2
        %v550 = vrot.slane %v306, 2
        %v551 = vsel %vm478, %v549, %v550
        %v552 = vrot.slane %v307, 2
        %v553 = vsel %vm478, %v550, %v552
        %v554 = vrot.slane %v308, 2
        %v555 = vrot.slane %v309, 2
        %v556 = vsel %vm478, %v554, %v555
        %v557 = vrot.slane %v310, 2
        %v558 = vsel %vm478, %v555, %v557
        %v591 = vld [vmem:[#allocation2] sm:$0xff]
        %v592 = vld [vmem:[#allocation2 + $0x8] sm:$0xff]
        %v593 = vld [vmem:[#allocation2 + $0x10] sm:$0xff]
        %v594 = vld [vmem:[#allocation2 + $0x18] sm:$0xff]
        %v595 = vld [vmem:[#allocation2 + $0x20] sm:$0xff]
        %v596 = vld [vmem:[#allocation2 + $0x28] sm:$0xff]
        %v597 = vld [vmem:[#allocation2 + $0x30] sm:$0xff]
        %v598 = vld [vmem:[#allocation2 + $0x38] sm:$0xff]
        %v599 = vld [vmem:[#allocation2 + $0x40] sm:$0xff]
        %v600 = vld [vmem:[#allocation2 + $0x48] sm:$0xff]
        %v601 = vld [vmem:[#allocation2 + $0x50] sm:$0xff]
        %v602 = vld [vmem:[#allocation2 + $0x58] sm:$0xff]
        %v603 = vld [vmem:[#allocation2 + $0x60] sm:$0xff]
        %v604 = vld [vmem:[#allocation2 + $0x68] sm:$0xff]
        %v605 = vld [vmem:[#allocation2 + $0x70] sm:$0xff]
        %v606 = vld [vmem:[#allocation2 + $0x78] sm:$0xff]
        %v607 = vld [vmem:[#allocation2 + $0x80] sm:$0xff]
        %v608 = vld [vmem:[#allocation2 + $0x88] sm:$0xff]
        %v609 = vld [vmem:[#allocation2 + $0x90] sm:$0xff]
        %v610 = vld [vmem:[#allocation2 + $0x98] sm:$0xff]
        %v611 = vld [vmem:[#allocation2 + $0xa0] sm:$0xff]
        %v612 = vld [vmem:[#allocation2 + $0xa8] sm:$0xff]
        %v613 = vld [vmem:[#allocation2 + $0xb0] sm:$0xff]
        %v614 = vld [vmem:[#allocation2 + $0xb8] sm:$0xff]
        %v615 = vld [vmem:[#allocation2 + $0xc0] sm:$0xff]
        %v616 = vld [vmem:[#allocation2 + $0xc8] sm:$0xff]
        %v617 = vld [vmem:[#allocation2 + $0xd0] sm:$0xff]
        %v618 = vld [vmem:[#allocation2 + $0xd8] sm:$0xff]
        %v619 = vld [vmem:[#allocation2 + $0xe0] sm:$0xff]
        %v620 = vld [vmem:[#allocation2 + $0xe8] sm:$0xff]
        %v621 = vld [vmem:[#allocation2 + $0xf0] sm:$0xff]
        %v622 = vld [vmem:[#allocation2 + $0xf8] sm:$0xff]
        %v623 = vpack.c.bf16 %v264, %v263
        %v624 = vpack.c.bf16 %v370, %v368
        %v625 = vpack.c.bf16 %v483, %v481
        %v626 = vpack.c.bf16 %v267, %v266
        %v627 = vpack.c.bf16 %v375, %v373
        %v628 = vpack.c.bf16 %v488, %v486
        %v629 = vpack.c.bf16 %v270, %v269
        %v630 = vpack.c.bf16 %v380, %v378
        %v631 = vpack.c.bf16 %v493, %v491
        %v632 = vpack.c.bf16 %v273, %v272
        %v633 = vpack.c.bf16 %v385, %v383
        %v634 = vpack.c.bf16 %v498, %v496
        %v635 = vpack.c.bf16 %v276, %v275
        %v636 = vpack.c.bf16 %v390, %v388
        %v637 = vpack.c.bf16 %v503, %v501
        %v638 = vpack.c.bf16 %v279, %v278
        %v639 = vpack.c.bf16 %v395, %v393
        %v640 = vpack.c.bf16 %v508, %v506
        %v641 = vpack.c.bf16 %v282, %v281
        %v642 = vpack.c.bf16 %v400, %v398
        %v643 = vpack.c.bf16 %v513, %v511
        %v644 = vpack.c.bf16 %v285, %v284
        %v645 = vpack.c.bf16 %v405, %v403
        %v646 = vpack.c.bf16 %v518, %v516
        %v647 = vpack.c.bf16 %v288, %v287
        %v648 = vpack.c.bf16 %v410, %v408
        %v649 = vpack.c.bf16 %v523, %v521
        %v650 = vpack.c.bf16 %v291, %v290
        %v651 = vpack.c.bf16 %v415, %v413
        %v652 = vpack.c.bf16 %v528, %v526
        %v653 = vpack.c.bf16 %v294, %v293
        %v654 = vpack.c.bf16 %v420, %v418
        %v655 = vpack.c.bf16 %v533, %v531
        %v656 = vpack.c.bf16 %v297, %v296
        %v657 = vpack.c.bf16 %v425, %v423
        %v658 = vpack.c.bf16 %v538, %v536
        %v659 = vpack.c.bf16 %v300, %v299
        %v660 = vpack.c.bf16 %v430, %v428
        %v661 = vpack.c.bf16 %v543, %v541
        %v662 = vpack.c.bf16 %v303, %v302
        %v663 = vpack.c.bf16 %v435, %v433
        %v664 = vpack.c.bf16 %v548, %v546
        %v665 = vpack.c.bf16 %v306, %v305
        %v666 = vpack.c.bf16 %v440, %v438
        %v667 = vpack.c.bf16 %v553, %v551
        %v668 = vpack.c.bf16 %v309, %v308
        %v669 = vpack.c.bf16 %v445, %v443
        %v670 = vpack.c.bf16 %v558, %v556
        %v671 = vld [vmem:[%s1] sm:$0xf]
        %v672 = vld [vmem:[%s1 + $0x4] sm:$0xf]
        %v673 = vld [vmem:[%s1 + $0x8] sm:$0xf]
        %v674 = vld [vmem:[%s1 + $0xc] sm:$0xf]
        %v675 = vld [vmem:[%s1 + $0x10] sm:$0xf]
        %v676 = vld [vmem:[%s1 + $0x14] sm:$0xf]
        %v677 = vld [vmem:[%s1 + $0x18] sm:$0xf]
        %v678 = vld [vmem:[%s1 + $0x1c] sm:$0xf]
        %v679 = vld [vmem:[%s1 + $0x20] sm:$0xf]
        %v680 = vld [vmem:[%s1 + $0x24] sm:$0xf]
        %v681 = vld [vmem:[%s1 + $0x28] sm:$0xf]
        %v682 = vld [vmem:[%s1 + $0x2c] sm:$0xf]
        %v683 = vld [vmem:[%s1 + $0x30] sm:$0xf]
        %v684 = vld [vmem:[%s1 + $0x34] sm:$0xf]
        %v685 = vld [vmem:[%s1 + $0x38] sm:$0xf]
        %v686 = vld [vmem:[%s1 + $0x3c] sm:$0xf]
        %v687 = vld [vmem:[%s1 + $0x40] sm:$0xf]
        %v688 = vld [vmem:[%s1 + $0x44] sm:$0xf]
        %v689 = vld [vmem:[%s1 + $0x48] sm:$0xf]
        %v690 = vld [vmem:[%s1 + $0x4c] sm:$0xf]
        %v691 = vld [vmem:[%s1 + $0x50] sm:$0xf]
        %v692 = vld [vmem:[%s1 + $0x54] sm:$0xf]
        %v693 = vld [vmem:[%s1 + $0x58] sm:$0xf]
        %v694 = vld [vmem:[%s1 + $0x5c] sm:$0xf]
        %v695 = vld [vmem:[%s1 + $0x60] sm:$0xf]
        %v696 = vld [vmem:[%s1 + $0x64] sm:$0xf]
        %v697 = vld [vmem:[%s1 + $0x68] sm:$0xf]
        %v698 = vld [vmem:[%s1 + $0x6c] sm:$0xf]
        %v699 = vld [vmem:[%s1 + $0x70] sm:$0xf]
        %v700 = vld [vmem:[%s1 + $0x74] sm:$0xf]
        %v701 = vld [vmem:[%s1 + $0x78] sm:$0xf]
        %v702 = vld [vmem:[%s1 + $0x7c] sm:$0xf]
        %v703 = vld [vmem:[%s1 + $0x80] sm:$0xf]
        %v704 = vld [vmem:[%s1 + $0x84] sm:$0xf]
        %v705 = vld [vmem:[%s1 + $0x88] sm:$0xf]
        %v706 = vld [vmem:[%s1 + $0x8c] sm:$0xf]
        %v707 = vld [vmem:[%s1 + $0x90] sm:$0xf]
        %v708 = vld [vmem:[%s1 + $0x94] sm:$0xf]
        %v709 = vld [vmem:[%s1 + $0x98] sm:$0xf]
        %v710 = vld [vmem:[%s1 + $0x9c] sm:$0xf]
        %v711 = vld [vmem:[%s1 + $0xa0] sm:$0xf]
        %v712 = vld [vmem:[%s1 + $0xa4] sm:$0xf]
        %v713 = vld [vmem:[%s1 + $0xa8] sm:$0xf]
        %v714 = vld [vmem:[%s1 + $0xac] sm:$0xf]
        %v715 = vld [vmem:[%s1 + $0xb0] sm:$0xf]
        %v716 = vld [vmem:[%s1 + $0xb4] sm:$0xf]
        %v717 = vld [vmem:[%s1 + $0xb8] sm:$0xf]
        %v718 = vld [vmem:[%s1 + $0xbc] sm:$0xf]
        %v767 = vunpack.c.l.b16 %v671
        %v768 = vunpack.c.l.b16 %v672
        %v769 = vunpack.c.l.b16 %v673
        %v770 = vunpack.c.l.b16 %v674
        %v771 = vunpack.c.l.b16 %v675
        %v772 = vunpack.c.l.b16 %v676
        %v773 = vunpack.c.l.b16 %v677
        %v774 = vunpack.c.l.b16 %v678
        %v775 = vunpack.c.l.b16 %v679
        %v776 = vunpack.c.l.b16 %v680
        %v777 = vunpack.c.l.b16 %v681
        %v778 = vunpack.c.l.b16 %v682
        %v779 = vunpack.c.l.b16 %v683
        %v780 = vunpack.c.l.b16 %v684
        %v781 = vunpack.c.l.b16 %v685
        %v782 = vunpack.c.l.b16 %v686
        %v783 = vunpack.c.l.b16 %v687
        %v784 = vunpack.c.l.b16 %v688
        %v785 = vunpack.c.l.b16 %v689
        %v786 = vunpack.c.l.b16 %v690
        %v787 = vunpack.c.l.b16 %v691
        %v788 = vunpack.c.l.b16 %v692
        %v789 = vunpack.c.l.b16 %v693
        %v790 = vunpack.c.l.b16 %v694
        %v791 = vunpack.c.l.b16 %v695
        %v792 = vunpack.c.l.b16 %v696
        %v793 = vunpack.c.l.b16 %v697
        %v794 = vunpack.c.l.b16 %v698
        %v795 = vunpack.c.l.b16 %v699
        %v796 = vunpack.c.l.b16 %v700
        %v797 = vunpack.c.l.b16 %v701
        %v798 = vunpack.c.l.b16 %v702
        %v799 = vunpack.c.l.b16 %v703
        %v800 = vunpack.c.l.b16 %v704
        %v801 = vunpack.c.l.b16 %v705
        %v802 = vunpack.c.l.b16 %v706
        %v803 = vunpack.c.l.b16 %v707
        %v804 = vunpack.c.l.b16 %v708
        %v805 = vunpack.c.l.b16 %v709
        %v806 = vunpack.c.l.b16 %v710
        %v807 = vunpack.c.l.b16 %v711
        %v808 = vunpack.c.l.b16 %v712
        %v809 = vunpack.c.l.b16 %v713
        %v810 = vunpack.c.l.b16 %v714
        %v811 = vunpack.c.l.b16 %v715
        %v812 = vunpack.c.l.b16 %v716
        %v813 = vunpack.c.l.b16 %v717
        %v814 = vunpack.c.l.b16 %v718
        %v815 = vpack.c.b16 %v768, %v767
        %v816 = vpack.c.b16 %v770, %v769
        %v817 = vpack.c.b16 %v772, %v771
        %v818 = vpack.c.b16 %v774, %v773
        %v819 = vpack.c.b16 %v776, %v775
        %v820 = vpack.c.b16 %v778, %v777
        %v821 = vpack.c.b16 %v780, %v779
        %v822 = vpack.c.b16 %v782, %v781
        %v823 = vpack.c.b16 %v784, %v783
        %v824 = vpack.c.b16 %v786, %v785
        %v825 = vpack.c.b16 %v788, %v787
        %v826 = vpack.c.b16 %v790, %v789
        %v827 = vpack.c.b16 %v792, %v791
        %v828 = vpack.c.b16 %v794, %v793
        %v829 = vpack.c.b16 %v796, %v795
        %v830 = vpack.c.b16 %v798, %v797
        %v831 = vpack.c.b16 %v800, %v799
        %v832 = vpack.c.b16 %v802, %v801
        %v833 = vpack.c.b16 %v804, %v803
        %v834 = vpack.c.b16 %v806, %v805
        %v835 = vpack.c.b16 %v808, %v807
        %v836 = vpack.c.b16 %v810, %v809
        %v837 = vpack.c.b16 %v812, %v811
        %v838 = vpack.c.b16 %v814, %v813
        %863 = vmatprep.subr.bf16.mxu0 0
        %864 = vmatpush1.bf16.msra.mxu0 %v815
        %865 = vmatprep.subr.bf16.mxu0 0
        %866 = vmatpush1.bf16.msra.mxu0 %v816
        %867 = vmatprep.subr.bf16.mxu0 0
        %868 = vmatpush1.bf16.msra.mxu0 %v817
        %869 = vmatprep.subr.bf16.mxu0 0
        %870 = vmatpush1.bf16.msra.mxu0 %v818
        %871 = vmatprep.subr.bf16.mxu0 0
        %872 = vmatpush1.bf16.msra.mxu0 %v819
        %873 = vmatprep.subr.bf16.mxu0 0
        %874 = vmatpush1.bf16.msra.mxu0 %v820
        %875 = vmatprep.subr.bf16.mxu0 0
        %876 = vmatpush1.bf16.msra.mxu0 %v821
        %877 = vmatprep.subr.bf16.mxu0 0
        %878 = vmatpush1.bf16.msra.mxu0 %v822
        %879 = vmatprep.subr.bf16.mxu0 0
        %880 = vmatpush1.bf16.msra.mxu0 %v823
        %881 = vmatprep.subr.bf16.mxu0 0
        %882 = vmatpush1.bf16.msra.mxu0 %v824
        %883 = vmatprep.subr.bf16.mxu0 0
        %884 = vmatpush1.bf16.msra.mxu0 %v825
        %885 = vmatprep.subr.bf16.mxu0 0
        %886 = vmatpush1.bf16.msra.mxu0 %v826
        %887 = vmatprep.subr.bf16.mxu0 0
        %888 = vmatpush1.bf16.msra.mxu0 %v827
        %889 = vmatprep.subr.bf16.mxu0 0
        %890 = vmatpush1.bf16.msra.mxu0 %v828
        %891 = vmatprep.subr.bf16.mxu0 0
        %892 = vmatpush1.bf16.msra.mxu0 %v829
        %893 = vmatprep.subr.bf16.mxu0 0
        %894 = vmatpush1.bf16.msra.mxu0 %v830
        %895 = vmatprep.mubr.bf16.mxu0 %v624
        %896 = vmatmul.mubr.bf16.gmra.mrb[0].mxu0 %v623
        %v897 = vpop.f32.mrb[0].mxu0
        %v898 = vadd.f32 0.0, %v897
        %v899 = vpop.f32.mrb[0].mxu0
        %v900 = vpop.f32.mrb[0].mxu0
        %v901 = vadd.f32 0.0, %v900
        %v902 = vpop.f32.mrb[0].mxu0
        %903 = vmatprep.mubr.bf16.mxu0 %v627
        %904 = vmatmul.mubr.bf16.gmra.mrb[0].mxu0 %v626
        %v905 = vpop.f32.mrb[0].mxu0
        %v906 = vadd.f32 0.0, %v905
        %v907 = vpop.f32.mrb[0].mxu0
        %v908 = vpop.f32.mrb[0].mxu0
        %v909 = vadd.f32 0.0, %v908
        %v910 = vpop.f32.mrb[0].mxu0
        %911 = vmatprep.mubr.bf16.mxu0 %v630
        %912 = vmatmul.mubr.bf16.gmra.mrb[0].mxu0 %v629
        %v913 = vpop.f32.mrb[0].mxu0
        %v914 = vadd.f32 0.0, %v913
        %v915 = vpop.f32.mrb[0].mxu0
        %v916 = vpop.f32.mrb[0].mxu0
        %v917 = vadd.f32 0.0, %v916
        %v918 = vpop.f32.mrb[0].mxu0
        %919 = vmatprep.mubr.bf16.mxu0 %v633
        %920 = vmatmul.mubr.bf16.gmra.mrb[0].mxu0 %v632
        %v921 = vpop.f32.mrb[0].mxu0
        %v922 = vadd.f32 0.0, %v921
        %v923 = vpop.f32.mrb[0].mxu0
        %v924 = vpop.f32.mrb[0].mxu0
        %v925 = vadd.f32 0.0, %v924
        %v926 = vpop.f32.mrb[0].mxu0
        %927 = vmatprep.mubr.bf16.mxu0 %v636
        %928 = vmatmul.mubr.bf16.gmra.mrb[0].mxu0 %v635
        %v929 = vpop.f32.mrb[0].mxu0
        %v930 = vadd.f32 0.0, %v929
        %v931 = vpop.f32.mrb[0].mxu0
        %v932 = vpop.f32.mrb[0].mxu0
        %v933 = vadd.f32 0.0, %v932
        %v934 = vpop.f32.mrb[0].mxu0
        %935 = vmatprep.mubr.bf16.mxu0 %v639
        %936 = vmatmul.mubr.bf16.gmra.mrb[0].mxu0 %v638
        %v937 = vpop.f32.mrb[0].mxu0
        %v938 = vadd.f32 0.0, %v937
        %v939 = vpop.f32.mrb[0].mxu0
        %v940 = vpop.f32.mrb[0].mxu0
        %v941 = vadd.f32 0.0, %v940
        %v942 = vpop.f32.mrb[0].mxu0
        %943 = vmatprep.mubr.bf16.mxu0 %v642
        %944 = vmatmul.mubr.bf16.gmra.mrb[0].mxu0 %v641
        %v945 = vpop.f32.mrb[0].mxu0
        %v946 = vadd.f32 0.0, %v945
        %v947 = vpop.f32.mrb[0].mxu0
        %v948 = vpop.f32.mrb[0].mxu0
        %v949 = vadd.f32 0.0, %v948
        %v950 = vpop.f32.mrb[0].mxu0
        %951 = vmatprep.mubr.bf16.mxu0 %v645
        %952 = vmatmul.mubr.bf16.gmra.mrb[0].mxu0 %v644
        %v953 = vpop.f32.mrb[0].mxu0
        %v954 = vadd.f32 0.0, %v953
        %v955 = vpop.f32.mrb[0].mxu0
        %v956 = vpop.f32.mrb[0].mxu0
        %v957 = vadd.f32 0.0, %v956
        %v958 = vpop.f32.mrb[0].mxu0
        %959 = vmatprep.mubr.bf16.mxu0 %v648
        %960 = vmatmul.mubr.bf16.gmra.mrb[0].mxu0 %v647
        %v961 = vpop.f32.mrb[0].mxu0
        %v962 = vadd.f32 0.0, %v961
        %v963 = vpop.f32.mrb[0].mxu0
        %v964 = vpop.f32.mrb[0].mxu0
        %v965 = vadd.f32 0.0, %v964
        %v966 = vpop.f32.mrb[0].mxu0
        %967 = vmatprep.mubr.bf16.mxu0 %v651
        %968 = vmatmul.mubr.bf16.gmra.mrb[0].mxu0 %v650
        %v969 = vpop.f32.mrb[0].mxu0
        %v970 = vadd.f32 0.0, %v969
        %v971 = vpop.f32.mrb[0].mxu0
        %v972 = vpop.f32.mrb[0].mxu0
        %v973 = vadd.f32 0.0, %v972
        %v974 = vpop.f32.mrb[0].mxu0
        %975 = vmatprep.mubr.bf16.mxu0 %v654
        %976 = vmatmul.mubr.bf16.gmra.mrb[0].mxu0 %v653
        %v977 = vpop.f32.mrb[0].mxu0
        %v978 = vadd.f32 0.0, %v977
        %v979 = vpop.f32.mrb[0].mxu0
        %v980 = vpop.f32.mrb[0].mxu0
        %v981 = vadd.f32 0.0, %v980
        %v982 = vpop.f32.mrb[0].mxu0
        %983 = vmatprep.mubr.bf16.mxu0 %v657
        %984 = vmatmul.mubr.bf16.gmra.mrb[0].mxu0 %v656
        %v985 = vpop.f32.mrb[0].mxu0
        %v986 = vadd.f32 0.0, %v985
        %v987 = vpop.f32.mrb[0].mxu0
        %v988 = vpop.f32.mrb[0].mxu0
        %v989 = vadd.f32 0.0, %v988
        %v990 = vpop.f32.mrb[0].mxu0
        %991 = vmatprep.mubr.bf16.mxu0 %v660
        %992 = vmatmul.mubr.bf16.gmra.mrb[0].mxu0 %v659
        %v993 = vpop.f32.mrb[0].mxu0
        %v994 = vadd.f32 0.0, %v993
        %v995 = vpop.f32.mrb[0].mxu0
        %v996 = vpop.f32.mrb[0].mxu0
        %v997 = vadd.f32 0.0, %v996
        %v998 = vpop.f32.mrb[0].mxu0
        %999 = vmatprep.mubr.bf16.mxu0 %v663
        %1000 = vmatmul.mubr.bf16.gmra.mrb[0].mxu0 %v662
        %v1001 = vpop.f32.mrb[0].mxu0
        %v1002 = vadd.f32 0.0, %v1001
        %v1003 = vpop.f32.mrb[0].mxu0
        %v1004 = vpop.f32.mrb[0].mxu0
        %v1005 = vadd.f32 0.0, %v1004
        %v1006 = vpop.f32.mrb[0].mxu0
        %1007 = vmatprep.mubr.bf16.mxu0 %v666
        %1008 = vmatmul.mubr.bf16.gmra.mrb[0].mxu0 %v665
        %v1009 = vpop.f32.mrb[0].mxu0
        %v1010 = vadd.f32 0.0, %v1009
        %v1011 = vpop.f32.mrb[0].mxu0
        %v1012 = vpop.f32.mrb[0].mxu0
        %v1013 = vadd.f32 0.0, %v1012
        %v1014 = vpop.f32.mrb[0].mxu0
        %1015 = vmatprep.mubr.bf16.mxu0 %v669
        %1016 = vmatmul.mubr.bf16.gmra.mrb[0].mxu0 %v668
        %v1017 = vpop.f32.mrb[0].mxu0
        %v1018 = vadd.f32 0.0, %v1017
        %v1019 = vpop.f32.mrb[0].mxu0
        %v1020 = vpop.f32.mrb[0].mxu0
        %v1021 = vadd.f32 0.0, %v1020
        %v1022 = vpop.f32.mrb[0].mxu0
        %1023 = vdwg.mxu0
        %1024 = vmatprep.subr.bf16.mxu0 0
        %1025 = vmatpush1.bf16.msra.mxu0 %v831
        %1026 = vmatprep.subr.bf16.mxu0 0
        %1027 = vmatpush1.bf16.msra.mxu0 %v832
        %1028 = vmatprep.subr.bf16.mxu0 0
        %1029 = vmatpush1.bf16.msra.mxu0 %v833
        %1030 = vmatprep.subr.bf16.mxu0 0
        %1031 = vmatpush1.bf16.msra.mxu0 %v834
        %1032 = vmatprep.subr.bf16.mxu0 0
        %1033 = vmatpush1.bf16.msra.mxu0 %v835
        %1034 = vmatprep.subr.bf16.mxu0 0
        %1035 = vmatpush1.bf16.msra.mxu0 %v836
        %1036 = vmatprep.subr.bf16.mxu0 0
        %1037 = vmatpush1.bf16.msra.mxu0 %v837
        %1038 = vmatprep.subr.bf16.mxu0 0
        %1039 = vmatpush1.bf16.msra.mxu0 %v838
        %1040 = vmatprep.subr.bf16.mxu0 0
        %1041 = vmatpush1.bf16.msra.mxu0 0
        %1042 = vmatprep.subr.bf16.mxu0 0
        %1043 = vmatpush1.bf16.msra.mxu0 0
        %1044 = vmatprep.subr.bf16.mxu0 0
        %1045 = vmatpush1.bf16.msra.mxu0 0
        %1046 = vmatprep.subr.bf16.mxu0 0
        %1047 = vmatpush1.bf16.msra.mxu0 0
        %1048 = vmatprep.subr.bf16.mxu0 0
        %1049 = vmatpush1.bf16.msra.mxu0 0
        %1050 = vmatprep.subr.bf16.mxu0 0
        %1051 = vmatpush1.bf16.msra.mxu0 0
        %1052 = vmatprep.subr.bf16.mxu0 0
        %1053 = vmatpush1.bf16.msra.mxu0 0
        %1054 = vmatprep.subr.bf16.mxu0 0
        %1055 = vmatpush1.bf16.msra.mxu0 0
        %1056 = vmatprep.mubr.bf16.mxu0 0
        %1057 = vmatmul.mubr.bf16.gmra.mrb[0].mxu0 %v625
        %v1058 = vpop.f32.mrb[0].mxu0
        %v1059 = vadd.f32 %v898, %v1058
        %v1060 = vpop.f32.mrb[0].mxu0
        %v1061 = vpop.f32.mrb[0].mxu0
        %v1062 = vadd.f32 %v901, %v1061
        %v1063 = vpop.f32.mrb[0].mxu0
        %1064 = vmatprep.mubr.bf16.mxu0 0
        %1065 = vmatmul.mubr.bf16.gmra.mrb[0].mxu0 %v628
        %v1066 = vpop.f32.mrb[0].mxu0
        %v1067 = vadd.f32 %v906, %v1066
        %v1068 = vpop.f32.mrb[0].mxu0
        %v1069 = vpop.f32.mrb[0].mxu0
        %v1070 = vadd.f32 %v909, %v1069
        %v1071 = vpop.f32.mrb[0].mxu0
        %1072 = vmatprep.mubr.bf16.mxu0 0
        %1073 = vmatmul.mubr.bf16.gmra.mrb[0].mxu0 %v631
        %v1074 = vpop.f32.mrb[0].mxu0
        %v1075 = vadd.f32 %v914, %v1074
        %v1076 = vpop.f32.mrb[0].mxu0
        %v1077 = vpop.f32.mrb[0].mxu0
        %v1078 = vadd.f32 %v917, %v1077
        %v1079 = vpop.f32.mrb[0].mxu0
        %1080 = vmatprep.mubr.bf16.mxu0 0
        %1081 = vmatmul.mubr.bf16.gmra.mrb[0].mxu0 %v634
        %v1082 = vpop.f32.mrb[0].mxu0
        %v1083 = vadd.f32 %v922, %v1082
        %v1084 = vpop.f32.mrb[0].mxu0
        %v1085 = vpop.f32.mrb[0].mxu0
        %v1086 = vadd.f32 %v925, %v1085
        %v1087 = vpop.f32.mrb[0].mxu0
        %1088 = vmatprep.mubr.bf16.mxu0 0
        %1089 = vmatmul.mubr.bf16.gmra.mrb[0].mxu0 %v637
        %v1090 = vpop.f32.mrb[0].mxu0
        %v1091 = vadd.f32 %v930, %v1090
        %v1092 = vpop.f32.mrb[0].mxu0
        %v1093 = vpop.f32.mrb[0].mxu0
        %v1094 = vadd.f32 %v933, %v1093
        %v1095 = vpop.f32.mrb[0].mxu0
        %1096 = vmatprep.mubr.bf16.mxu0 0
        %1097 = vmatmul.mubr.bf16.gmra.mrb[0].mxu0 %v640
        %v1098 = vpop.f32.mrb[0].mxu0
        %v1099 = vadd.f32 %v938, %v1098
        %v1100 = vpop.f32.mrb[0].mxu0
        %v1101 = vpop.f32.mrb[0].mxu0
        %v1102 = vadd.f32 %v941, %v1101
        %v1103 = vpop.f32.mrb[0].mxu0
        %1104 = vmatprep.mubr.bf16.mxu0 0
        %1105 = vmatmul.mubr.bf16.gmra.mrb[0].mxu0 %v643
        %v1106 = vpop.f32.mrb[0].mxu0
        %v1107 = vadd.f32 %v946, %v1106
        %v1108 = vpop.f32.mrb[0].mxu0
        %v1109 = vpop.f32.mrb[0].mxu0
        %v1110 = vadd.f32 %v949, %v1109
        %v1111 = vpop.f32.mrb[0].mxu0
        %1112 = vmatprep.mubr.bf16.mxu0 0
        %1113 = vmatmul.mubr.bf16.gmra.mrb[0].mxu0 %v646
        %v1114 = vpop.f32.mrb[0].mxu0
        %v1115 = vadd.f32 %v954, %v1114
        %v1116 = vpop.f32.mrb[0].mxu0
        %v1117 = vpop.f32.mrb[0].mxu0
        %v1118 = vadd.f32 %v957, %v1117
        %v1119 = vpop.f32.mrb[0].mxu0
        %1120 = vmatprep.mubr.bf16.mxu0 0
        %1121 = vmatmul.mubr.bf16.gmra.mrb[0].mxu0 %v649
        %v1122 = vpop.f32.mrb[0].mxu0
        %v1123 = vadd.f32 %v962, %v1122
        %v1124 = vpop.f32.mrb[0].mxu0
        %v1125 = vpop.f32.mrb[0].mxu0
        %v1126 = vadd.f32 %v965, %v1125
        %v1127 = vpop.f32.mrb[0].mxu0
        %1128 = vmatprep.mubr.bf16.mxu0 0
        %1129 = vmatmul.mubr.bf16.gmra.mrb[0].mxu0 %v652
        %v1130 = vpop.f32.mrb[0].mxu0
        %v1131 = vadd.f32 %v970, %v1130
        %v1132 = vpop.f32.mrb[0].mxu0
        %v1133 = vpop.f32.mrb[0].mxu0
        %v1134 = vadd.f32 %v973, %v1133
        %v1135 = vpop.f32.mrb[0].mxu0
        %1136 = vmatprep.mubr.bf16.mxu0 0
        %1137 = vmatmul.mubr.bf16.gmra.mrb[0].mxu0 %v655
        %v1138 = vpop.f32.mrb[0].mxu0
        %v1139 = vadd.f32 %v978, %v1138
        %v1140 = vpop.f32.mrb[0].mxu0
        %v1141 = vpop.f32.mrb[0].mxu0
        %v1142 = vadd.f32 %v981, %v1141
        %v1143 = vpop.f32.mrb[0].mxu0
        %1144 = vmatprep.mubr.bf16.mxu0 0
        %1145 = vmatmul.mubr.bf16.gmra.mrb[0].mxu0 %v658
        %v1146 = vpop.f32.mrb[0].mxu0
        %v1147 = vadd.f32 %v986, %v1146
        %v1148 = vpop.f32.mrb[0].mxu0
        %v1149 = vpop.f32.mrb[0].mxu0
        %v1150 = vadd.f32 %v989, %v1149
        %v1151 = vpop.f32.mrb[0].mxu0
        %1152 = vmatprep.mubr.bf16.mxu0 0
        %1153 = vmatmul.mubr.bf16.gmra.mrb[0].mxu0 %v661
        %v1154 = vpop.f32.mrb[0].mxu0
        %v1155 = vadd.f32 %v994, %v1154
        %v1156 = vpop.f32.mrb[0].mxu0
        %v1157 = vpop.f32.mrb[0].mxu0
        %v1158 = vadd.f32 %v997, %v1157
        %v1159 = vpop.f32.mrb[0].mxu0
        %1160 = vmatprep.mubr.bf16.mxu0 0
        %1161 = vmatmul.mubr.bf16.gmra.mrb[0].mxu0 %v664
        %v1162 = vpop.f32.mrb[0].mxu0
        %v1163 = vadd.f32 %v1002, %v1162
        %v1164 = vpop.f32.mrb[0].mxu0
        %v1165 = vpop.f32.mrb[0].mxu0
        %v1166 = vadd.f32 %v1005, %v1165
        %v1167 = vpop.f32.mrb[0].mxu0
        %1168 = vmatprep.mubr.bf16.mxu0 0
        %1169 = vmatmul.mubr.bf16.gmra.mrb[0].mxu0 %v667
        %v1170 = vpop.f32.mrb[0].mxu0
        %v1171 = vadd.f32 %v1010, %v1170
        %v1172 = vpop.f32.mrb[0].mxu0
        %v1173 = vpop.f32.mrb[0].mxu0
        %v1174 = vadd.f32 %v1013, %v1173
        %v1175 = vpop.f32.mrb[0].mxu0
        %1176 = vmatprep.mubr.bf16.mxu0 0
        %1177 = vmatmul.mubr.bf16.gmra.mrb[0].mxu0 %v670
        %v1178 = vpop.f32.mrb[0].mxu0
        %v1179 = vadd.f32 %v1018, %v1178
        %v1180 = vpop.f32.mrb[0].mxu0
        %v1181 = vpop.f32.mrb[0].mxu0
        %v1182 = vadd.f32 %v1021, %v1181
        %v1183 = vpop.f32.mrb[0].mxu0
        %1184 = vdwg.mxu0
        %v1185 = vadd.f32 %v591, %v1059
        %v1186 = vadd.f32 %v592, %v1062
        %v1187 = vadd.f32 %v593, %v1067
        %v1188 = vadd.f32 %v594, %v1070
        %v1189 = vadd.f32 %v595, %v1075
        %v1190 = vadd.f32 %v596, %v1078
        %v1191 = vadd.f32 %v597, %v1083
        %v1192 = vadd.f32 %v598, %v1086
        %v1193 = vadd.f32 %v599, %v1091
        %v1194 = vadd.f32 %v600, %v1094
        %v1195 = vadd.f32 %v601, %v1099
        %v1196 = vadd.f32 %v602, %v1102
        %v1197 = vadd.f32 %v603, %v1107
        %v1198 = vadd.f32 %v604, %v1110
        %v1199 = vadd.f32 %v605, %v1115
        %v1200 = vadd.f32 %v606, %v1118
        %v1201 = vadd.f32 %v607, %v1123
        %v1202 = vadd.f32 %v608, %v1126
        %v1203 = vadd.f32 %v609, %v1131
        %v1204 = vadd.f32 %v610, %v1134
        %v1205 = vadd.f32 %v611, %v1139
        %v1206 = vadd.f32 %v612, %v1142
        %v1207 = vadd.f32 %v613, %v1147
        %v1208 = vadd.f32 %v614, %v1150
        %v1209 = vadd.f32 %v615, %v1155
        %v1210 = vadd.f32 %v616, %v1158
        %v1211 = vadd.f32 %v617, %v1163
        %v1212 = vadd.f32 %v618, %v1166
        %v1213 = vadd.f32 %v619, %v1171
        %v1214 = vadd.f32 %v620, %v1174
        %v1215 = vadd.f32 %v621, %v1179
        %v1216 = vadd.f32 %v622, %v1182
        %1217 = vst [vmem:[#allocation2] sm:$0xff] %v1185
        %1218 = vst [vmem:[#allocation2 + $0x8] sm:$0xff] %v1186
        %1219 = vst [vmem:[#allocation2 + $0x10] sm:$0xff] %v1187
        %1220 = vst [vmem:[#allocation2 + $0x18] sm:$0xff] %v1188
        %1221 = vst [vmem:[#allocation2 + $0x20] sm:$0xff] %v1189
        %1222 = vst [vmem:[#allocation2 + $0x28] sm:$0xff] %v1190
        %1223 = vst [vmem:[#allocation2 + $0x30] sm:$0xff] %v1191
        %1224 = vst [vmem:[#allocation2 + $0x38] sm:$0xff] %v1192
        %1225 = vst [vmem:[#allocation2 + $0x40] sm:$0xff] %v1193
        %1226 = vst [vmem:[#allocation2 + $0x48] sm:$0xff] %v1194
        %1227 = vst [vmem:[#allocation2 + $0x50] sm:$0xff] %v1195
        %1228 = vst [vmem:[#allocation2 + $0x58] sm:$0xff] %v1196
        %1229 = vst [vmem:[#allocation2 + $0x60] sm:$0xff] %v1197
        %1230 = vst [vmem:[#allocation2 + $0x68] sm:$0xff] %v1198
        %1231 = vst [vmem:[#allocation2 + $0x70] sm:$0xff] %v1199
        %1232 = vst [vmem:[#allocation2 + $0x78] sm:$0xff] %v1200
        %1233 = vst [vmem:[#allocation2 + $0x80] sm:$0xff] %v1201
        %1234 = vst [vmem:[#allocation2 + $0x88] sm:$0xff] %v1202
        %1235 = vst [vmem:[#allocation2 + $0x90] sm:$0xff] %v1203
        %1236 = vst [vmem:[#allocation2 + $0x98] sm:$0xff] %v1204
        %1237 = vst [vmem:[#allocation2 + $0xa0] sm:$0xff] %v1205
        %1238 = vst [vmem:[#allocation2 + $0xa8] sm:$0xff] %v1206
        %1239 = vst [vmem:[#allocation2 + $0xb0] sm:$0xff] %v1207
        %1240 = vst [vmem:[#allocation2 + $0xb8] sm:$0xff] %v1208
        %1241 = vst [vmem:[#allocation2 + $0xc0] sm:$0xff] %v1209
        %1242 = vst [vmem:[#allocation2 + $0xc8] sm:$0xff] %v1210
        %1243 = vst [vmem:[#allocation2 + $0xd0] sm:$0xff] %v1211
        %1244 = vst [vmem:[#allocation2 + $0xd8] sm:$0xff] %v1212
        %1245 = vst [vmem:[#allocation2 + $0xe0] sm:$0xff] %v1213
        %1246 = vst [vmem:[#allocation2 + $0xe8] sm:$0xff] %v1214
        %1247 = vst [vmem:[#allocation2 + $0xf0] sm:$0xff] %v1215
        %1248 = vst [vmem:[#allocation2 + $0xf8] sm:$0xff] %v1216
        %v1252 = vrot.slane %v311, 1
        %v1253 = vrot.slane %v312, 1
        %v1254 = vsel %vm365, %v1252, %v1253
        %v1255 = vrot.slane %v313, 1
        %v1256 = vsel %vm365, %v1253, %v1255
        %v1259 = vrot.slane %v311, 2
        %v1260 = vrot.slane %v312, 2
        %v1261 = vsel %vm478, %v1259, %v1260
        %v1262 = vrot.slane %v313, 2
        %v1263 = vsel %vm478, %v1260, %v1262
        %v1266 = vld [vmem:[#allocation2] sm:$0xff]
        %v1267 = vld [vmem:[#allocation2 + $0x8] sm:$0xff]
        %v1268 = vld [vmem:[#allocation2 + $0x10] sm:$0xff]
        %v1269 = vld [vmem:[#allocation2 + $0x18] sm:$0xff]
        %v1270 = vld [vmem:[#allocation2 + $0x20] sm:$0xff]
        %v1271 = vld [vmem:[#allocation2 + $0x28] sm:$0xff]
        %v1272 = vld [vmem:[#allocation2 + $0x30] sm:$0xff]
        %v1273 = vld [vmem:[#allocation2 + $0x38] sm:$0xff]
        %v1274 = vld [vmem:[#allocation2 + $0x40] sm:$0xff]
        %v1275 = vld [vmem:[#allocation2 + $0x48] sm:$0xff]
        %v1276 = vld [vmem:[#allocation2 + $0x50] sm:$0xff]
        %v1277 = vld [vmem:[#allocation2 + $0x58] sm:$0xff]
        %v1278 = vld [vmem:[#allocation2 + $0x60] sm:$0xff]
        %v1279 = vld [vmem:[#allocation2 + $0x68] sm:$0xff]
        %v1280 = vld [vmem:[#allocation2 + $0x70] sm:$0xff]
        %v1281 = vld [vmem:[#allocation2 + $0x78] sm:$0xff]
        %v1282 = vld [vmem:[#allocation2 + $0x80] sm:$0xff]
        %v1283 = vld [vmem:[#allocation2 + $0x88] sm:$0xff]
        %v1284 = vld [vmem:[#allocation2 + $0x90] sm:$0xff]
        %v1285 = vld [vmem:[#allocation2 + $0x98] sm:$0xff]
        %v1286 = vld [vmem:[#allocation2 + $0xa0] sm:$0xff]
        %v1287 = vld [vmem:[#allocation2 + $0xa8] sm:$0xff]
        %v1288 = vld [vmem:[#allocation2 + $0xb0] sm:$0xff]
        %v1289 = vld [vmem:[#allocation2 + $0xb8] sm:$0xff]
        %v1290 = vld [vmem:[#allocation2 + $0xc0] sm:$0xff]
        %v1291 = vld [vmem:[#allocation2 + $0xc8] sm:$0xff]
        %v1292 = vld [vmem:[#allocation2 + $0xd0] sm:$0xff]
        %v1293 = vld [vmem:[#allocation2 + $0xd8] sm:$0xff]
        %v1294 = vld [vmem:[#allocation2 + $0xe0] sm:$0xff]
        %v1295 = vld [vmem:[#allocation2 + $0xe8] sm:$0xff]
        %v1296 = vld [vmem:[#allocation2 + $0xf0] sm:$0xff]
        %v1297 = vld [vmem:[#allocation2 + $0xf8] sm:$0xff]
        %v1298 = vpack.c.bf16 %v312, %v311
        %v1299 = vpack.c.bf16 %v1256, %v1254
        %v1300 = vpack.c.bf16 %v1263, %v1261
        %s1301 = scalar_lea.vmem %s1, 192
        %v1302 = vld [vmem:[%s1301] sm:$0xf]
        %v1303 = vld [vmem:[%s1301 + $0x4] sm:$0xf]
        %v1304 = vld [vmem:[%s1301 + $0x8] sm:$0xf]
        %v1305 = vld [vmem:[%s1301 + $0xc] sm:$0xf]
        %v1306 = vld [vmem:[%s1301 + $0x10] sm:$0xf]
        %v1307 = vld [vmem:[%s1301 + $0x14] sm:$0xf]
        %v1308 = vld [vmem:[%s1301 + $0x18] sm:$0xf]
        %v1309 = vld [vmem:[%s1301 + $0x1c] sm:$0xf]
        %v1310 = vld [vmem:[%s1301 + $0x20] sm:$0xf]
        %v1311 = vld [vmem:[%s1301 + $0x24] sm:$0xf]
        %v1312 = vld [vmem:[%s1301 + $0x28] sm:$0xf]
        %v1313 = vld [vmem:[%s1301 + $0x2c] sm:$0xf]
        %v1314 = vld [vmem:[%s1301 + $0x30] sm:$0xf]
        %v1315 = vld [vmem:[%s1301 + $0x34] sm:$0xf]
        %v1316 = vld [vmem:[%s1301 + $0x38] sm:$0xf]
        %v1317 = vld [vmem:[%s1301 + $0x3c] sm:$0xf]
        %v1318 = vld [vmem:[%s1301 + $0x40] sm:$0xf]
        %v1319 = vld [vmem:[%s1301 + $0x44] sm:$0xf]
        %v1320 = vld [vmem:[%s1301 + $0x48] sm:$0xf]
        %v1321 = vld [vmem:[%s1301 + $0x4c] sm:$0xf]
        %v1322 = vld [vmem:[%s1301 + $0x50] sm:$0xf]
        %v1323 = vld [vmem:[%s1301 + $0x54] sm:$0xf]
        %v1324 = vld [vmem:[%s1301 + $0x58] sm:$0xf]
        %v1325 = vld [vmem:[%s1301 + $0x5c] sm:$0xf]
        %v1326 = vld [vmem:[%s1301 + $0x60] sm:$0xf]
        %v1327 = vld [vmem:[%s1301 + $0x64] sm:$0xf]
        %v1328 = vld [vmem:[%s1301 + $0x68] sm:$0xf]
        %v1329 = vld [vmem:[%s1301 + $0x6c] sm:$0xf]
        %v1330 = vld [vmem:[%s1301 + $0x70] sm:$0xf]
        %v1331 = vld [vmem:[%s1301 + $0x74] sm:$0xf]
        %v1332 = vld [vmem:[%s1301 + $0x78] sm:$0xf]
        %v1333 = vld [vmem:[%s1301 + $0x7c] sm:$0xf]
        %v1334 = vld [vmem:[%s1301 + $0x80] sm:$0xf]
        %v1335 = vld [vmem:[%s1301 + $0x84] sm:$0xf]
        %v1336 = vld [vmem:[%s1301 + $0x88] sm:$0xf]
        %v1337 = vld [vmem:[%s1301 + $0x8c] sm:$0xf]
        %v1338 = vld [vmem:[%s1301 + $0x90] sm:$0xf]
        %v1339 = vld [vmem:[%s1301 + $0x94] sm:$0xf]
        %v1340 = vld [vmem:[%s1301 + $0x98] sm:$0xf]
        %v1341 = vld [vmem:[%s1301 + $0x9c] sm:$0xf]
        %v1342 = vld [vmem:[%s1301 + $0xa0] sm:$0xf]
        %v1343 = vld [vmem:[%s1301 + $0xa4] sm:$0xf]
        %v1344 = vld [vmem:[%s1301 + $0xa8] sm:$0xf]
        %v1345 = vld [vmem:[%s1301 + $0xac] sm:$0xf]
        %v1346 = vld [vmem:[%s1301 + $0xb0] sm:$0xf]
        %v1347 = vld [vmem:[%s1301 + $0xb4] sm:$0xf]
        %v1348 = vld [vmem:[%s1301 + $0xb8] sm:$0xf]
        %v1349 = vld [vmem:[%s1301 + $0xbc] sm:$0xf]
        %v1398 = vunpack.c.l.b16 %v1302
        %v1399 = vunpack.c.l.b16 %v1303
        %v1400 = vunpack.c.l.b16 %v1304
        %v1401 = vunpack.c.l.b16 %v1305
        %v1402 = vunpack.c.l.b16 %v1306
        %v1403 = vunpack.c.l.b16 %v1307
        %v1404 = vunpack.c.l.b16 %v1308
        %v1405 = vunpack.c.l.b16 %v1309
        %v1406 = vunpack.c.l.b16 %v1310
        %v1407 = vunpack.c.l.b16 %v1311
        %v1408 = vunpack.c.l.b16 %v1312
        %v1409 = vunpack.c.l.b16 %v1313
        %v1410 = vunpack.c.l.b16 %v1314
        %v1411 = vunpack.c.l.b16 %v1315
        %v1412 = vunpack.c.l.b16 %v1316
        %v1413 = vunpack.c.l.b16 %v1317
        %v1414 = vunpack.c.l.b16 %v1318
        %v1415 = vunpack.c.l.b16 %v1319
        %v1416 = vunpack.c.l.b16 %v1320
        %v1417 = vunpack.c.l.b16 %v1321
        %v1418 = vunpack.c.l.b16 %v1322
        %v1419 = vunpack.c.l.b16 %v1323
        %v1420 = vunpack.c.l.b16 %v1324
        %v1421 = vunpack.c.l.b16 %v1325
        %v1422 = vunpack.c.l.b16 %v1326
        %v1423 = vunpack.c.l.b16 %v1327
        %v1424 = vunpack.c.l.b16 %v1328
        %v1425 = vunpack.c.l.b16 %v1329
        %v1426 = vunpack.c.l.b16 %v1330
        %v1427 = vunpack.c.l.b16 %v1331
        %v1428 = vunpack.c.l.b16 %v1332
        %v1429 = vunpack.c.l.b16 %v1333
        %v1430 = vunpack.c.l.b16 %v1334
        %v1431 = vunpack.c.l.b16 %v1335
        %v1432 = vunpack.c.l.b16 %v1336
        %v1433 = vunpack.c.l.b16 %v1337
        %v1434 = vunpack.c.l.b16 %v1338
        %v1435 = vunpack.c.l.b16 %v1339
        %v1436 = vunpack.c.l.b16 %v1340
        %v1437 = vunpack.c.l.b16 %v1341
        %v1438 = vunpack.c.l.b16 %v1342
        %v1439 = vunpack.c.l.b16 %v1343
        %v1440 = vunpack.c.l.b16 %v1344
        %v1441 = vunpack.c.l.b16 %v1345
        %v1442 = vunpack.c.l.b16 %v1346
        %v1443 = vunpack.c.l.b16 %v1347
        %v1444 = vunpack.c.l.b16 %v1348
        %v1445 = vunpack.c.l.b16 %v1349
        %v1446 = vpack.c.b16 %v1399, %v1398
        %v1447 = vpack.c.b16 %v1401, %v1400
        %v1448 = vpack.c.b16 %v1403, %v1402
        %v1449 = vpack.c.b16 %v1405, %v1404
        %v1450 = vpack.c.b16 %v1407, %v1406
        %v1451 = vpack.c.b16 %v1409, %v1408
        %v1452 = vpack.c.b16 %v1411, %v1410
        %v1453 = vpack.c.b16 %v1413, %v1412
        %v1454 = vpack.c.b16 %v1415, %v1414
        %v1455 = vpack.c.b16 %v1417, %v1416
        %v1456 = vpack.c.b16 %v1419, %v1418
        %v1457 = vpack.c.b16 %v1421, %v1420
        %v1458 = vpack.c.b16 %v1423, %v1422
        %v1459 = vpack.c.b16 %v1425, %v1424
        %v1460 = vpack.c.b16 %v1427, %v1426
        %v1461 = vpack.c.b16 %v1429, %v1428
        %v1462 = vpack.c.b16 %v1431, %v1430
        %v1463 = vpack.c.b16 %v1433, %v1432
        %v1464 = vpack.c.b16 %v1435, %v1434
        %v1465 = vpack.c.b16 %v1437, %v1436
        %v1466 = vpack.c.b16 %v1439, %v1438
        %v1467 = vpack.c.b16 %v1441, %v1440
        %v1468 = vpack.c.b16 %v1443, %v1442
        %v1469 = vpack.c.b16 %v1445, %v1444
        %1494 = vmatprep.subr.bf16.mxu0 0
        %1495 = vmatpush1.bf16.msra.mxu0 %v1446
        %1496 = vmatprep.subr.bf16.mxu0 0
        %1497 = vmatpush1.bf16.msra.mxu0 %v1447
        %1498 = vmatprep.subr.bf16.mxu0 0
        %1499 = vmatpush1.bf16.msra.mxu0 %v1448
        %1500 = vmatprep.subr.bf16.mxu0 0
        %1501 = vmatpush1.bf16.msra.mxu0 %v1449
        %1502 = vmatprep.subr.bf16.mxu0 0
        %1503 = vmatpush1.bf16.msra.mxu0 %v1450
        %1504 = vmatprep.subr.bf16.mxu0 0
        %1505 = vmatpush1.bf16.msra.mxu0 %v1451
        %1506 = vmatprep.subr.bf16.mxu0 0
        %1507 = vmatpush1.bf16.msra.mxu0 %v1452
        %1508 = vmatprep.subr.bf16.mxu0 0
        %1509 = vmatpush1.bf16.msra.mxu0 %v1453
        %1510 = vmatprep.subr.bf16.mxu0 0
        %1511 = vmatpush1.bf16.msra.mxu0 %v1454
        %1512 = vmatprep.subr.bf16.mxu0 0
        %1513 = vmatpush1.bf16.msra.mxu0 %v1455
        %1514 = vmatprep.subr.bf16.mxu0 0
        %1515 = vmatpush1.bf16.msra.mxu0 %v1456
        %1516 = vmatprep.subr.bf16.mxu0 0
        %1517 = vmatpush1.bf16.msra.mxu0 %v1457
        %1518 = vmatprep.subr.bf16.mxu0 0
        %1519 = vmatpush1.bf16.msra.mxu0 %v1458
        %1520 = vmatprep.subr.bf16.mxu0 0
        %1521 = vmatpush1.bf16.msra.mxu0 %v1459
        %1522 = vmatprep.subr.bf16.mxu0 0
        %1523 = vmatpush1.bf16.msra.mxu0 %v1460
        %1524 = vmatprep.subr.bf16.mxu0 0
        %1525 = vmatpush1.bf16.msra.mxu0 %v1461
        %1526 = vmatprep.mubr.bf16.mxu0 %v627
        %1527 = vmatmul.mubr.bf16.gmra.mrb[0].mxu0 %v626
        %v1528 = vpop.f32.mrb[0].mxu0
        %v1529 = vadd.f32 0.0, %v1528
        %v1530 = vpop.f32.mrb[0].mxu0
        %v1531 = vpop.f32.mrb[0].mxu0
        %v1532 = vadd.f32 0.0, %v1531
        %v1533 = vpop.f32.mrb[0].mxu0
        %1534 = vmatprep.mubr.bf16.mxu0 %v630
        %1535 = vmatmul.mubr.bf16.gmra.mrb[0].mxu0 %v629
        %v1536 = vpop.f32.mrb[0].mxu0
        %v1537 = vadd.f32 0.0, %v1536
        %v1538 = vpop.f32.mrb[0].mxu0
        %v1539 = vpop.f32.mrb[0].mxu0
        %v1540 = vadd.f32 0.0, %v1539
        %v1541 = vpop.f32.mrb[0].mxu0
        %1542 = vmatprep.mubr.bf16.mxu0 %v633
        %1543 = vmatmul.mubr.bf16.gmra.mrb[0].mxu0 %v632
        %v1544 = vpop.f32.mrb[0].mxu0
        %v1545 = vadd.f32 0.0, %v1544
        %v1546 = vpop.f32.mrb[0].mxu0
        %v1547 = vpop.f32.mrb[0].mxu0
        %v1548 = vadd.f32 0.0, %v1547
        %v1549 = vpop.f32.mrb[0].mxu0
        %1550 = vmatprep.mubr.bf16.mxu0 %v636
        %1551 = vmatmul.mubr.bf16.gmra.mrb[0].mxu0 %v635
        %v1552 = vpop.f32.mrb[0].mxu0
        %v1553 = vadd.f32 0.0, %v1552
        %v1554 = vpop.f32.mrb[0].mxu0
        %v1555 = vpop.f32.mrb[0].mxu0
        %v1556 = vadd.f32 0.0, %v1555
        %v1557 = vpop.f32.mrb[0].mxu0
        %1558 = vmatprep.mubr.bf16.mxu0 %v639
        %1559 = vmatmul.mubr.bf16.gmra.mrb[0].mxu0 %v638
        %v1560 = vpop.f32.mrb[0].mxu0
        %v1561 = vadd.f32 0.0, %v1560
        %v1562 = vpop.f32.mrb[0].mxu0
        %v1563 = vpop.f32.mrb[0].mxu0
        %v1564 = vadd.f32 0.0, %v1563
        %v1565 = vpop.f32.mrb[0].mxu0
        %1566 = vmatprep.mubr.bf16.mxu0 %v642
        %1567 = vmatmul.mubr.bf16.gmra.mrb[0].mxu0 %v641
        %v1568 = vpop.f32.mrb[0].mxu0
        %v1569 = vadd.f32 0.0, %v1568
        %v1570 = vpop.f32.mrb[0].mxu0
        %v1571 = vpop.f32.mrb[0].mxu0
        %v1572 = vadd.f32 0.0, %v1571
        %v1573 = vpop.f32.mrb[0].mxu0
        %1574 = vmatprep.mubr.bf16.mxu0 %v645
        %1575 = vmatmul.mubr.bf16.gmra.mrb[0].mxu0 %v644
        %v1576 = vpop.f32.mrb[0].mxu0
        %v1577 = vadd.f32 0.0, %v1576
        %v1578 = vpop.f32.mrb[0].mxu0
        %v1579 = vpop.f32.mrb[0].mxu0
        %v1580 = vadd.f32 0.0, %v1579
        %v1581 = vpop.f32.mrb[0].mxu0
        %1582 = vmatprep.mubr.bf16.mxu0 %v648
        %1583 = vmatmul.mubr.bf16.gmra.mrb[0].mxu0 %v647
        %v1584 = vpop.f32.mrb[0].mxu0
        %v1585 = vadd.f32 0.0, %v1584
        %v1586 = vpop.f32.mrb[0].mxu0
        %v1587 = vpop.f32.mrb[0].mxu0
        %v1588 = vadd.f32 0.0, %v1587
        %v1589 = vpop.f32.mrb[0].mxu0
        %1590 = vmatprep.mubr.bf16.mxu0 %v651
        %1591 = vmatmul.mubr.bf16.gmra.mrb[0].mxu0 %v650
        %v1592 = vpop.f32.mrb[0].mxu0
        %v1593 = vadd.f32 0.0, %v1592
        %v1594 = vpop.f32.mrb[0].mxu0
        %v1595 = vpop.f32.mrb[0].mxu0
        %v1596 = vadd.f32 0.0, %v1595
        %v1597 = vpop.f32.mrb[0].mxu0
        %1598 = vmatprep.mubr.bf16.mxu0 %v654
        %1599 = vmatmul.mubr.bf16.gmra.mrb[0].mxu0 %v653
        %v1600 = vpop.f32.mrb[0].mxu0
        %v1601 = vadd.f32 0.0, %v1600
        %v1602 = vpop.f32.mrb[0].mxu0
        %v1603 = vpop.f32.mrb[0].mxu0
        %v1604 = vadd.f32 0.0, %v1603
        %v1605 = vpop.f32.mrb[0].mxu0
        %1606 = vmatprep.mubr.bf16.mxu0 %v657
        %1607 = vmatmul.mubr.bf16.gmra.mrb[0].mxu0 %v656
        %v1608 = vpop.f32.mrb[0].mxu0
        %v1609 = vadd.f32 0.0, %v1608
        %v1610 = vpop.f32.mrb[0].mxu0
        %v1611 = vpop.f32.mrb[0].mxu0
        %v1612 = vadd.f32 0.0, %v1611
        %v1613 = vpop.f32.mrb[0].mxu0
        %1614 = vmatprep.mubr.bf16.mxu0 %v660
        %1615 = vmatmul.mubr.bf16.gmra.mrb[0].mxu0 %v659
        %v1616 = vpop.f32.mrb[0].mxu0
        %v1617 = vadd.f32 0.0, %v1616
        %v1618 = vpop.f32.mrb[0].mxu0
        %v1619 = vpop.f32.mrb[0].mxu0
        %v1620 = vadd.f32 0.0, %v1619
        %v1621 = vpop.f32.mrb[0].mxu0
        %1622 = vmatprep.mubr.bf16.mxu0 %v663
        %1623 = vmatmul.mubr.bf16.gmra.mrb[0].mxu0 %v662
        %v1624 = vpop.f32.mrb[0].mxu0
        %v1625 = vadd.f32 0.0, %v1624
        %v1626 = vpop.f32.mrb[0].mxu0
        %v1627 = vpop.f32.mrb[0].mxu0
        %v1628 = vadd.f32 0.0, %v1627
        %v1629 = vpop.f32.mrb[0].mxu0
        %1630 = vmatprep.mubr.bf16.mxu0 %v666
        %1631 = vmatmul.mubr.bf16.gmra.mrb[0].mxu0 %v665
        %v1632 = vpop.f32.mrb[0].mxu0
        %v1633 = vadd.f32 0.0, %v1632
        %v1634 = vpop.f32.mrb[0].mxu0
        %v1635 = vpop.f32.mrb[0].mxu0
        %v1636 = vadd.f32 0.0, %v1635
        %v1637 = vpop.f32.mrb[0].mxu0
        %1638 = vmatprep.mubr.bf16.mxu0 %v669
        %1639 = vmatmul.mubr.bf16.gmra.mrb[0].mxu0 %v668
        %v1640 = vpop.f32.mrb[0].mxu0
        %v1641 = vadd.f32 0.0, %v1640
        %v1642 = vpop.f32.mrb[0].mxu0
        %v1643 = vpop.f32.mrb[0].mxu0
        %v1644 = vadd.f32 0.0, %v1643
        %v1645 = vpop.f32.mrb[0].mxu0
        %1646 = vmatprep.mubr.bf16.mxu0 %v1299
        %1647 = vmatmul.mubr.bf16.gmra.mrb[0].mxu0 %v1298
        %v1648 = vpop.f32.mrb[0].mxu0
        %v1649 = vadd.f32 0.0, %v1648
        %v1650 = vpop.f32.mrb[0].mxu0
        %v1651 = vpop.f32.mrb[0].mxu0
        %v1652 = vadd.f32 0.0, %v1651
        %v1653 = vpop.f32.mrb[0].mxu0
        %1654 = vdwg.mxu0
        %1655 = vmatprep.subr.bf16.mxu0 0
        %1656 = vmatpush1.bf16.msra.mxu0 %v1462
        %1657 = vmatprep.subr.bf16.mxu0 0
        %1658 = vmatpush1.bf16.msra.mxu0 %v1463
        %1659 = vmatprep.subr.bf16.mxu0 0
        %1660 = vmatpush1.bf16.msra.mxu0 %v1464
        %1661 = vmatprep.subr.bf16.mxu0 0
        %1662 = vmatpush1.bf16.msra.mxu0 %v1465
        %1663 = vmatprep.subr.bf16.mxu0 0
        %1664 = vmatpush1.bf16.msra.mxu0 %v1466
        %1665 = vmatprep.subr.bf16.mxu0 0
        %1666 = vmatpush1.bf16.msra.mxu0 %v1467
        %1667 = vmatprep.subr.bf16.mxu0 0
        %1668 = vmatpush1.bf16.msra.mxu0 %v1468
        %1669 = vmatprep.subr.bf16.mxu0 0
        %1670 = vmatpush1.bf16.msra.mxu0 %v1469
        %1671 = vmatprep.subr.bf16.mxu0 0
        %1672 = vmatpush1.bf16.msra.mxu0 0
        %1673 = vmatprep.subr.bf16.mxu0 0
        %1674 = vmatpush1.bf16.msra.mxu0 0
        %1675 = vmatprep.subr.bf16.mxu0 0
        %1676 = vmatpush1.bf16.msra.mxu0 0
        %1677 = vmatprep.subr.bf16.mxu0 0
        %1678 = vmatpush1.bf16.msra.mxu0 0
        %1679 = vmatprep.subr.bf16.mxu0 0
        %1680 = vmatpush1.bf16.msra.mxu0 0
        %1681 = vmatprep.subr.bf16.mxu0 0
        %1682 = vmatpush1.bf16.msra.mxu0 0
        %1683 = vmatprep.subr.bf16.mxu0 0
        %1684 = vmatpush1.bf16.msra.mxu0 0
        %1685 = vmatprep.subr.bf16.mxu0 0
        %1686 = vmatpush1.bf16.msra.mxu0 0
        %1687 = vmatprep.mubr.bf16.mxu0 0
        %1688 = vmatmul.mubr.bf16.gmra.mrb[0].mxu0 %v628
        %v1689 = vpop.f32.mrb[0].mxu0
        %v1690 = vadd.f32 %v1529, %v1689
        %v1691 = vpop.f32.mrb[0].mxu0
        %v1692 = vpop.f32.mrb[0].mxu0
        %v1693 = vadd.f32 %v1532, %v1692
        %v1694 = vpop.f32.mrb[0].mxu0
        %1695 = vmatprep.mubr.bf16.mxu0 0
        %1696 = vmatmul.mubr.bf16.gmra.mrb[0].mxu0 %v631
        %v1697 = vpop.f32.mrb[0].mxu0
        %v1698 = vadd.f32 %v1537, %v1697
        %v1699 = vpop.f32.mrb[0].mxu0
        %v1700 = vpop.f32.mrb[0].mxu0
        %v1701 = vadd.f32 %v1540, %v1700
        %v1702 = vpop.f32.mrb[0].mxu0
        %1703 = vmatprep.mubr.bf16.mxu0 0
        %1704 = vmatmul.mubr.bf16.gmra.mrb[0].mxu0 %v634
        %v1705 = vpop.f32.mrb[0].mxu0
        %v1706 = vadd.f32 %v1545, %v1705
        %v1707 = vpop.f32.mrb[0].mxu0
        %v1708 = vpop.f32.mrb[0].mxu0
        %v1709 = vadd.f32 %v1548, %v1708
        %v1710 = vpop.f32.mrb[0].mxu0
        %1711 = vmatprep.mubr.bf16.mxu0 0
        %1712 = vmatmul.mubr.bf16.gmra.mrb[0].mxu0 %v637
        %v1713 = vpop.f32.mrb[0].mxu0
        %v1714 = vadd.f32 %v1553, %v1713
        %v1715 = vpop.f32.mrb[0].mxu0
        %v1716 = vpop.f32.mrb[0].mxu0
        %v1717 = vadd.f32 %v1556, %v1716
        %v1718 = vpop.f32.mrb[0].mxu0
        %1719 = vmatprep.mubr.bf16.mxu0 0
        %1720 = vmatmul.mubr.bf16.gmra.mrb[0].mxu0 %v640
        %v1721 = vpop.f32.mrb[0].mxu0
        %v1722 = vadd.f32 %v1561, %v1721
        %v1723 = vpop.f32.mrb[0].mxu0
        %v1724 = vpop.f32.mrb[0].mxu0
        %v1725 = vadd.f32 %v1564, %v1724
        %v1726 = vpop.f32.mrb[0].mxu0
        %1727 = vmatprep.mubr.bf16.mxu0 0
        %1728 = vmatmul.mubr.bf16.gmra.mrb[0].mxu0 %v643
        %v1729 = vpop.f32.mrb[0].mxu0
        %v1730 = vadd.f32 %v1569, %v1729
        %v1731 = vpop.f32.mrb[0].mxu0
        %v1732 = vpop.f32.mrb[0].mxu0
        %v1733 = vadd.f32 %v1572, %v1732
        %v1734 = vpop.f32.mrb[0].mxu0
        %1735 = vmatprep.mubr.bf16.mxu0 0
        %1736 = vmatmul.mubr.bf16.gmra.mrb[0].mxu0 %v646
        %v1737 = vpop.f32.mrb[0].mxu0
        %v1738 = vadd.f32 %v1577, %v1737
        %v1739 = vpop.f32.mrb[0].mxu0
        %v1740 = vpop.f32.mrb[0].mxu0
        %v1741 = vadd.f32 %v1580, %v1740
        %v1742 = vpop.f32.mrb[0].mxu0
        %1743 = vmatprep.mubr.bf16.mxu0 0
        %1744 = vmatmul.mubr.bf16.gmra.mrb[0].mxu0 %v649
        %v1745 = vpop.f32.mrb[0].mxu0
        %v1746 = vadd.f32 %v1585, %v1745
        %v1747 = vpop.f32.mrb[0].mxu0
        %v1748 = vpop.f32.mrb[0].mxu0
        %v1749 = vadd.f32 %v1588, %v1748
        %v1750 = vpop.f32.mrb[0].mxu0
        %1751 = vmatprep.mubr.bf16.mxu0 0
        %1752 = vmatmul.mubr.bf16.gmra.mrb[0].mxu0 %v652
        %v1753 = vpop.f32.mrb[0].mxu0
        %v1754 = vadd.f32 %v1593, %v1753
        %v1755 = vpop.f32.mrb[0].mxu0
        %v1756 = vpop.f32.mrb[0].mxu0
        %v1757 = vadd.f32 %v1596, %v1756
        %v1758 = vpop.f32.mrb[0].mxu0
        %1759 = vmatprep.mubr.bf16.mxu0 0
        %1760 = vmatmul.mubr.bf16.gmra.mrb[0].mxu0 %v655
        %v1761 = vpop.f32.mrb[0].mxu0
        %v1762 = vadd.f32 %v1601, %v1761
        %v1763 = vpop.f32.mrb[0].mxu0
        %v1764 = vpop.f32.mrb[0].mxu0
        %v1765 = vadd.f32 %v1604, %v1764
        %v1766 = vpop.f32.mrb[0].mxu0
        %1767 = vmatprep.mubr.bf16.mxu0 0
        %1768 = vmatmul.mubr.bf16.gmra.mrb[0].mxu0 %v658
        %v1769 = vpop.f32.mrb[0].mxu0
        %v1770 = vadd.f32 %v1609, %v1769
        %v1771 = vpop.f32.mrb[0].mxu0
        %v1772 = vpop.f32.mrb[0].mxu0
        %v1773 = vadd.f32 %v1612, %v1772
        %v1774 = vpop.f32.mrb[0].mxu0
        %1775 = vmatprep.mubr.bf16.mxu0 0
        %1776 = vmatmul.mubr.bf16.gmra.mrb[0].mxu0 %v661
        %v1777 = vpop.f32.mrb[0].mxu0
        %v1778 = vadd.f32 %v1617, %v1777
        %v1779 = vpop.f32.mrb[0].mxu0
        %v1780 = vpop.f32.mrb[0].mxu0
        %v1781 = vadd.f32 %v1620, %v1780
        %v1782 = vpop.f32.mrb[0].mxu0
        %1783 = vmatprep.mubr.bf16.mxu0 0
        %1784 = vmatmul.mubr.bf16.gmra.mrb[0].mxu0 %v664
        %v1785 = vpop.f32.mrb[0].mxu0
        %v1786 = vadd.f32 %v1625, %v1785
        %v1787 = vpop.f32.mrb[0].mxu0
        %v1788 = vpop.f32.mrb[0].mxu0
        %v1789 = vadd.f32 %v1628, %v1788
        %v1790 = vpop.f32.mrb[0].mxu0
        %1791 = vmatprep.mubr.bf16.mxu0 0
        %1792 = vmatmul.mubr.bf16.gmra.mrb[0].mxu0 %v667
        %v1793 = vpop.f32.mrb[0].mxu0
        %v1794 = vadd.f32 %v1633, %v1793
        %v1795 = vpop.f32.mrb[0].mxu0
        %v1796 = vpop.f32.mrb[0].mxu0
        %v1797 = vadd.f32 %v1636, %v1796
        %v1798 = vpop.f32.mrb[0].mxu0
        %1799 = vmatprep.mubr.bf16.mxu0 0
        %1800 = vmatmul.mubr.bf16.gmra.mrb[0].mxu0 %v670
        %v1801 = vpop.f32.mrb[0].mxu0
        %v1802 = vadd.f32 %v1641, %v1801
        %v1803 = vpop.f32.mrb[0].mxu0
        %v1804 = vpop.f32.mrb[0].mxu0
        %v1805 = vadd.f32 %v1644, %v1804
        %v1806 = vpop.f32.mrb[0].mxu0
        %1807 = vmatprep.mubr.bf16.mxu0 0
        %1808 = vmatmul.mubr.bf16.gmra.mrb[0].mxu0 %v1300
        %v1809 = vpop.f32.mrb[0].mxu0
        %v1810 = vadd.f32 %v1649, %v1809
        %v1811 = vpop.f32.mrb[0].mxu0
        %v1812 = vpop.f32.mrb[0].mxu0
        %v1813 = vadd.f32 %v1652, %v1812
        %v1814 = vpop.f32.mrb[0].mxu0
        %1815 = vdwg.mxu0
        %v1816 = vadd.f32 %v1266, %v1690
        %v1817 = vadd.f32 %v1267, %v1693
        %v1818 = vadd.f32 %v1268, %v1698
        %v1819 = vadd.f32 %v1269, %v1701
        %v1820 = vadd.f32 %v1270, %v1706
        %v1821 = vadd.f32 %v1271, %v1709
        %v1822 = vadd.f32 %v1272, %v1714
        %v1823 = vadd.f32 %v1273, %v1717
        %v1824 = vadd.f32 %v1274, %v1722
        %v1825 = vadd.f32 %v1275, %v1725
        %v1826 = vadd.f32 %v1276, %v1730
        %v1827 = vadd.f32 %v1277, %v1733
        %v1828 = vadd.f32 %v1278, %v1738
        %v1829 = vadd.f32 %v1279, %v1741
        %v1830 = vadd.f32 %v1280, %v1746
        %v1831 = vadd.f32 %v1281, %v1749
        %v1832 = vadd.f32 %v1282, %v1754
        %v1833 = vadd.f32 %v1283, %v1757
        %v1834 = vadd.f32 %v1284, %v1762
        %v1835 = vadd.f32 %v1285, %v1765
        %v1836 = vadd.f32 %v1286, %v1770
        %v1837 = vadd.f32 %v1287, %v1773
        %v1838 = vadd.f32 %v1288, %v1778
        %v1839 = vadd.f32 %v1289, %v1781
        %v1840 = vadd.f32 %v1290, %v1786
        %v1841 = vadd.f32 %v1291, %v1789
        %v1842 = vadd.f32 %v1292, %v1794
        %v1843 = vadd.f32 %v1293, %v1797
        %v1844 = vadd.f32 %v1294, %v1802
        %v1845 = vadd.f32 %v1295, %v1805
        %v1846 = vadd.f32 %v1296, %v1810
        %v1847 = vadd.f32 %v1297, %v1813
        %1848 = vst [vmem:[#allocation2] sm:$0xff] %v1816
        %1849 = vst [vmem:[#allocation2 + $0x8] sm:$0xff] %v1817
        %1850 = vst [vmem:[#allocation2 + $0x10] sm:$0xff] %v1818
        %1851 = vst [vmem:[#allocation2 + $0x18] sm:$0xff] %v1819
        %1852 = vst [vmem:[#allocation2 + $0x20] sm:$0xff] %v1820
        %1853 = vst [vmem:[#allocation2 + $0x28] sm:$0xff] %v1821
        %1854 = vst [vmem:[#allocation2 + $0x30] sm:$0xff] %v1822
        %1855 = vst [vmem:[#allocation2 + $0x38] sm:$0xff] %v1823
        %1856 = vst [vmem:[#allocation2 + $0x40] sm:$0xff] %v1824
        %1857 = vst [vmem:[#allocation2 + $0x48] sm:$0xff] %v1825
        %1858 = vst [vmem:[#allocation2 + $0x50] sm:$0xff] %v1826
        %1859 = vst [vmem:[#allocation2 + $0x58] sm:$0xff] %v1827
        %1860 = vst [vmem:[#allocation2 + $0x60] sm:$0xff] %v1828
        %1861 = vst [vmem:[#allocation2 + $0x68] sm:$0xff] %v1829
        %1862 = vst [vmem:[#allocation2 + $0x70] sm:$0xff] %v1830
        %1863 = vst [vmem:[#allocation2 + $0x78] sm:$0xff] %v1831
        %1864 = vst [vmem:[#allocation2 + $0x80] sm:$0xff] %v1832
        %1865 = vst [vmem:[#allocation2 + $0x88] sm:$0xff] %v1833
        %1866 = vst [vmem:[#allocation2 + $0x90] sm:$0xff] %v1834
        %1867 = vst [vmem:[#allocation2 + $0x98] sm:$0xff] %v1835
        %1868 = vst [vmem:[#allocation2 + $0xa0] sm:$0xff] %v1836
        %1869 = vst [vmem:[#allocation2 + $0xa8] sm:$0xff] %v1837
        %1870 = vst [vmem:[#allocation2 + $0xb0] sm:$0xff] %v1838
        %1871 = vst [vmem:[#allocation2 + $0xb8] sm:$0xff] %v1839
        %1872 = vst [vmem:[#allocation2 + $0xc0] sm:$0xff] %v1840
        %1873 = vst [vmem:[#allocation2 + $0xc8] sm:$0xff] %v1841
        %1874 = vst [vmem:[#allocation2 + $0xd0] sm:$0xff] %v1842
        %1875 = vst [vmem:[#allocation2 + $0xd8] sm:$0xff] %v1843
        %1876 = vst [vmem:[#allocation2 + $0xe0] sm:$0xff] %v1844
        %1877 = vst [vmem:[#allocation2 + $0xe8] sm:$0xff] %v1845
        %1878 = vst [vmem:[#allocation2 + $0xf0] sm:$0xff] %v1846
        %1879 = vst [vmem:[#allocation2 + $0xf8] sm:$0xff] %v1847
        %v1883 = vrot.slane %v314, 1
        %v1884 = vrot.slane %v315, 1
        %v1885 = vsel %vm365, %v1883, %v1884
        %v1886 = vrot.slane %v316, 1
        %v1887 = vsel %vm365, %v1884, %v1886
        %v1890 = vrot.slane %v314, 2
        %v1891 = vrot.slane %v315, 2
        %v1892 = vsel %vm478, %v1890, %v1891
        %v1893 = vrot.slane %v316, 2
        %v1894 = vsel %vm478, %v1891, %v1893
        %v1897 = vld [vmem:[#allocation2] sm:$0xff]
        %v1898 = vld [vmem:[#allocation2 + $0x8] sm:$0xff]
        %v1899 = vld [vmem:[#allocation2 + $0x10] sm:$0xff]
        %v1900 = vld [vmem:[#allocation2 + $0x18] sm:$0xff]
        %v1901 = vld [vmem:[#allocation2 + $0x20] sm:$0xff]
        %v1902 = vld [vmem:[#allocation2 + $0x28] sm:$0xff]
        %v1903 = vld [vmem:[#allocation2 + $0x30] sm:$0xff]
        %v1904 = vld [vmem:[#allocation2 + $0x38] sm:$0xff]
        %v1905 = vld [vmem:[#allocation2 + $0x40] sm:$0xff]
        %v1906 = vld [vmem:[#allocation2 + $0x48] sm:$0xff]
        %v1907 = vld [vmem:[#allocation2 + $0x50] sm:$0xff]
        %v1908 = vld [vmem:[#allocation2 + $0x58] sm:$0xff]
        %v1909 = vld [vmem:[#allocation2 + $0x60] sm:$0xff]
        %v1910 = vld [vmem:[#allocation2 + $0x68] sm:$0xff]
        %v1911 = vld [vmem:[#allocation2 + $0x70] sm:$0xff]
        %v1912 = vld [vmem:[#allocation2 + $0x78] sm:$0xff]
        %v1913 = vld [vmem:[#allocation2 + $0x80] sm:$0xff]
        %v1914 = vld [vmem:[#allocation2 + $0x88] sm:$0xff]
        %v1915 = vld [vmem:[#allocation2 + $0x90] sm:$0xff]
        %v1916 = vld [vmem:[#allocation2 + $0x98] sm:$0xff]
        %v1917 = vld [vmem:[#allocation2 + $0xa0] sm:$0xff]
        %v1918 = vld [vmem:[#allocation2 + $0xa8] sm:$0xff]
        %v1919 = vld [vmem:[#allocation2 + $0xb0] sm:$0xff]
        %v1920 = vld [vmem:[#allocation2 + $0xb8] sm:$0xff]
        %v1921 = vld [vmem:[#allocation2 + $0xc0] sm:$0xff]
        %v1922 = vld [vmem:[#allocation2 + $0xc8] sm:$0xff]
        %v1923 = vld [vmem:[#allocation2 + $0xd0] sm:$0xff]
        %v1924 = vld [vmem:[#allocation2 + $0xd8] sm:$0xff]
        %v1925 = vld [vmem:[#allocation2 + $0xe0] sm:$0xff]
        %v1926 = vld [vmem:[#allocation2 + $0xe8] sm:$0xff]
        %v1927 = vld [vmem:[#allocation2 + $0xf0] sm:$0xff]
        %v1928 = vld [vmem:[#allocation2 + $0xf8] sm:$0xff]
        %v1929 = vpack.c.bf16 %v315, %v314
        %v1930 = vpack.c.bf16 %v1887, %v1885
        %v1931 = vpack.c.bf16 %v1894, %v1892
        %s1932 = scalar_lea.vmem %s1, 384
        %v1933 = vld [vmem:[%s1932] sm:$0xf]
        %v1934 = vld [vmem:[%s1932 + $0x4] sm:$0xf]
        %v1935 = vld [vmem:[%s1932 + $0x8] sm:$0xf]
        %v1936 = vld [vmem:[%s1932 + $0xc] sm:$0xf]
        %v1937 = vld [vmem:[%s1932 + $0x10] sm:$0xf]
        %v1938 = vld [vmem:[%s1932 + $0x14] sm:$0xf]
        %v1939 = vld [vmem:[%s1932 + $0x18] sm:$0xf]
        %v1940 = vld [vmem:[%s1932 + $0x1c] sm:$0xf]
        %v1941 = vld [vmem:[%s1932 + $0x20] sm:$0xf]
        %v1942 = vld [vmem:[%s1932 + $0x24] sm:$0xf]
        %v1943 = vld [vmem:[%s1932 + $0x28] sm:$0xf]
        %v1944 = vld [vmem:[%s1932 + $0x2c] sm:$0xf]
        %v1945 = vld [vmem:[%s1932 + $0x30] sm:$0xf]
        %v1946 = vld [vmem:[%s1932 + $0x34] sm:$0xf]
        %v1947 = vld [vmem:[%s1932 + $0x38] sm:$0xf]
        %v1948 = vld [vmem:[%s1932 + $0x3c] sm:$0xf]
        %v1949 = vld [vmem:[%s1932 + $0x40] sm:$0xf]
        %v1950 = vld [vmem:[%s1932 + $0x44] sm:$0xf]
        %v1951 = vld [vmem:[%s1932 + $0x48] sm:$0xf]
        %v1952 = vld [vmem:[%s1932 + $0x4c] sm:$0xf]
        %v1953 = vld [vmem:[%s1932 + $0x50] sm:$0xf]
        %v1954 = vld [vmem:[%s1932 + $0x54] sm:$0xf]
        %v1955 = vld [vmem:[%s1932 + $0x58] sm:$0xf]
        %v1956 = vld [vmem:[%s1932 + $0x5c] sm:$0xf]
        %v1957 = vld [vmem:[%s1932 + $0x60] sm:$0xf]
        %v1958 = vld [vmem:[%s1932 + $0x64] sm:$0xf]
        %v1959 = vld [vmem:[%s1932 + $0x68] sm:$0xf]
        %v1960 = vld [vmem:[%s1932 + $0x6c] sm:$0xf]
        %v1961 = vld [vmem:[%s1932 + $0x70] sm:$0xf]
        %v1962 = vld [vmem:[%s1932 + $0x74] sm:$0xf]
        %v1963 = vld [vmem:[%s1932 + $0x78] sm:$0xf]
        %v1964 = vld [vmem:[%s1932 + $0x7c] sm:$0xf]
        %v1965 = vld [vmem:[%s1932 + $0x80] sm:$0xf]
        %v1966 = vld [vmem:[%s1932 + $0x84] sm:$0xf]
        %v1967 = vld [vmem:[%s1932 + $0x88] sm:$0xf]
        %v1968 = vld [vmem:[%s1932 + $0x8c] sm:$0xf]
        %v1969 = vld [vmem:[%s1932 + $0x90] sm:$0xf]
        %v1970 = vld [vmem:[%s1932 + $0x94] sm:$0xf]
        %v1971 = vld [vmem:[%s1932 + $0x98] sm:$0xf]
        %v1972 = vld [vmem:[%s1932 + $0x9c] sm:$0xf]
        %v1973 = vld [vmem:[%s1932 + $0xa0] sm:$0xf]
        %v1974 = vld [vmem:[%s1932 + $0xa4] sm:$0xf]
        %v1975 = vld [vmem:[%s1932 + $0xa8] sm:$0xf]
        %v1976 = vld [vmem:[%s1932 + $0xac] sm:$0xf]
        %v1977 = vld [vmem:[%s1932 + $0xb0] sm:$0xf]
        %v1978 = vld [vmem:[%s1932 + $0xb4] sm:$0xf]
        %v1979 = vld [vmem:[%s1932 + $0xb8] sm:$0xf]
        %v1980 = vld [vmem:[%s1932 + $0xbc] sm:$0xf]
        %v2029 = vunpack.c.l.b16 %v1933
        %v2030 = vunpack.c.l.b16 %v1934
        %v2031 = vunpack.c.l.b16 %v1935
        %v2032 = vunpack.c.l.b16 %v1936
        %v2033 = vunpack.c.l.b16 %v1937
        %v2034 = vunpack.c.l.b16 %v1938
        %v2035 = vunpack.c.l.b16 %v1939
        %v2036 = vunpack.c.l.b16 %v1940
        %v2037 = vunpack.c.l.b16 %v1941
        %v2038 = vunpack.c.l.b16 %v1942
        %v2039 = vunpack.c.l.b16 %v1943
        %v2040 = vunpack.c.l.b16 %v1944
        %v2041 = vunpack.c.l.b16 %v1945
        %v2042 = vunpack.c.l.b16 %v1946
        %v2043 = vunpack.c.l.b16 %v1947
        %v2044 = vunpack.c.l.b16 %v1948
        %v2045 = vunpack.c.l.b16 %v1949
        %v2046 = vunpack.c.l.b16 %v1950
        %v2047 = vunpack.c.l.b16 %v1951
        %v2048 = vunpack.c.l.b16 %v1952
        %v2049 = vunpack.c.l.b16 %v1953
        %v2050 = vunpack.c.l.b16 %v1954
        %v2051 = vunpack.c.l.b16 %v1955
        %v2052 = vunpack.c.l.b16 %v1956
        %v2053 = vunpack.c.l.b16 %v1957
        %v2054 = vunpack.c.l.b16 %v1958
        %v2055 = vunpack.c.l.b16 %v1959
        %v2056 = vunpack.c.l.b16 %v1960
        %v2057 = vunpack.c.l.b16 %v1961
        %v2058 = vunpack.c.l.b16 %v1962
        %v2059 = vunpack.c.l.b16 %v1963
        %v2060 = vunpack.c.l.b16 %v1964
        %v2061 = vunpack.c.l.b16 %v1965
        %v2062 = vunpack.c.l.b16 %v1966
        %v2063 = vunpack.c.l.b16 %v1967
        %v2064 = vunpack.c.l.b16 %v1968
        %v2065 = vunpack.c.l.b16 %v1969
        %v2066 = vunpack.c.l.b16 %v1970
        %v2067 = vunpack.c.l.b16 %v1971
        %v2068 = vunpack.c.l.b16 %v1972
        %v2069 = vunpack.c.l.b16 %v1973
        %v2070 = vunpack.c.l.b16 %v1974
        %v2071 = vunpack.c.l.b16 %v1975
        %v2072 = vunpack.c.l.b16 %v1976
        %v2073 = vunpack.c.l.b16 %v1977
        %v2074 = vunpack.c.l.b16 %v1978
        %v2075 = vunpack.c.l.b16 %v1979
        %v2076 = vunpack.c.l.b16 %v1980
        %v2077 = vpack.c.b16 %v2030, %v2029
        %v2078 = vpack.c.b16 %v2032, %v2031
        %v2079 = vpack.c.b16 %v2034, %v2033
        %v2080 = vpack.c.b16 %v2036, %v2035
        %v2081 = vpack.c.b16 %v2038, %v2037
        %v2082 = vpack.c.b16 %v2040, %v2039
        %v2083 = vpack.c.b16 %v2042, %v2041
        %v2084 = vpack.c.b16 %v2044, %v2043
        %v2085 = vpack.c.b16 %v2046, %v2045
        %v2086 = vpack.c.b16 %v2048, %v2047
        %v2087 = vpack.c.b16 %v2050, %v2049
        %v2088 = vpack.c.b16 %v2052, %v2051
        %v2089 = vpack.c.b16 %v2054, %v2053
        %v2090 = vpack.c.b16 %v2056, %v2055
        %v2091 = vpack.c.b16 %v2058, %v2057
        %v2092 = vpack.c.b16 %v2060, %v2059
        %v2093 = vpack.c.b16 %v2062, %v2061
        %v2094 = vpack.c.b16 %v2064, %v2063
        %v2095 = vpack.c.b16 %v2066, %v2065
        %v2096 = vpack.c.b16 %v2068, %v2067
        %v2097 = vpack.c.b16 %v2070, %v2069
        %v2098 = vpack.c.b16 %v2072, %v2071
        %v2099 = vpack.c.b16 %v2074, %v2073
        %v2100 = vpack.c.b16 %v2076, %v2075
        %2125 = vmatprep.subr.bf16.mxu0 0
        %2126 = vmatpush1.bf16.msra.mxu0 %v2077
        %2127 = vmatprep.subr.bf16.mxu0 0
        %2128 = vmatpush1.bf16.msra.mxu0 %v2078
        %2129 = vmatprep.subr.bf16.mxu0 0
        %2130 = vmatpush1.bf16.msra.mxu0 %v2079
        %2131 = vmatprep.subr.bf16.mxu0 0
        %2132 = vmatpush1.bf16.msra.mxu0 %v2080
        %2133 = vmatprep.subr.bf16.mxu0 0
        %2134 = vmatpush1.bf16.msra.mxu0 %v2081
        %2135 = vmatprep.subr.bf16.mxu0 0
        %2136 = vmatpush1.bf16.msra.mxu0 %v2082
        %2137 = vmatprep.subr.bf16.mxu0 0
        %2138 = vmatpush1.bf16.msra.mxu0 %v2083
        %2139 = vmatprep.subr.bf16.mxu0 0
        %2140 = vmatpush1.bf16.msra.mxu0 %v2084
        %2141 = vmatprep.subr.bf16.mxu0 0
        %2142 = vmatpush1.bf16.msra.mxu0 %v2085
        %2143 = vmatprep.subr.bf16.mxu0 0
        %2144 = vmatpush1.bf16.msra.mxu0 %v2086
        %2145 = vmatprep.subr.bf16.mxu0 0
        %2146 = vmatpush1.bf16.msra.mxu0 %v2087
        %2147 = vmatprep.subr.bf16.mxu0 0
        %2148 = vmatpush1.bf16.msra.mxu0 %v2088
        %2149 = vmatprep.subr.bf16.mxu0 0
        %2150 = vmatpush1.bf16.msra.mxu0 %v2089
        %2151 = vmatprep.subr.bf16.mxu0 0
        %2152 = vmatpush1.bf16.msra.mxu0 %v2090
        %2153 = vmatprep.subr.bf16.mxu0 0
        %2154 = vmatpush1.bf16.msra.mxu0 %v2091
        %2155 = vmatprep.subr.bf16.mxu0 0
        %2156 = vmatpush1.bf16.msra.mxu0 %v2092
        %2157 = vmatprep.mubr.bf16.mxu0 %v630
        %2158 = vmatmul.mubr.bf16.gmra.mrb[0].mxu0 %v629
        %v2159 = vpop.f32.mrb[0].mxu0
        %v2160 = vadd.f32 0.0, %v2159
        %v2161 = vpop.f32.mrb[0].mxu0
        %v2162 = vpop.f32.mrb[0].mxu0
        %v2163 = vadd.f32 0.0, %v2162
        %v2164 = vpop.f32.mrb[0].mxu0
        %2165 = vmatprep.mubr.bf16.mxu0 %v633
        %2166 = vmatmul.mubr.bf16.gmra.mrb[0].mxu0 %v632
        %v2167 = vpop.f32.mrb[0].mxu0
        %v2168 = vadd.f32 0.0, %v2167
        %v2169 = vpop.f32.mrb[0].mxu0
        %v2170 = vpop.f32.mrb[0].mxu0
        %v2171 = vadd.f32 0.0, %v2170
        %v2172 = vpop.f32.mrb[0].mxu0
        %2173 = vmatprep.mubr.bf16.mxu0 %v636
        %2174 = vmatmul.mubr.bf16.gmra.mrb[0].mxu0 %v635
        %v2175 = vpop.f32.mrb[0].mxu0
        %v2176 = vadd.f32 0.0, %v2175
        %v2177 = vpop.f32.mrb[0].mxu0
        %v2178 = vpop.f32.mrb[0].mxu0
        %v2179 = vadd.f32 0.0, %v2178
        %v2180 = vpop.f32.mrb[0].mxu0
        %2181 = vmatprep.mubr.bf16.mxu0 %v639
        %2182 = vmatmul.mubr.bf16.gmra.mrb[0].mxu0 %v638
        %v2183 = vpop.f32.mrb[0].mxu0
        %v2184 = vadd.f32 0.0, %v2183
        %v2185 = vpop.f32.mrb[0].mxu0
        %v2186 = vpop.f32.mrb[0].mxu0
        %v2187 = vadd.f32 0.0, %v2186
        %v2188 = vpop.f32.mrb[0].mxu0
        %2189 = vmatprep.mubr.bf16.mxu0 %v642
        %2190 = vmatmul.mubr.bf16.gmra.mrb[0].mxu0 %v641
        %v2191 = vpop.f32.mrb[0].mxu0
        %v2192 = vadd.f32 0.0, %v2191
        %v2193 = vpop.f32.mrb[0].mxu0
        %v2194 = vpop.f32.mrb[0].mxu0
        %v2195 = vadd.f32 0.0, %v2194
        %v2196 = vpop.f32.mrb[0].mxu0
        %2197 = vmatprep.mubr.bf16.mxu0 %v645
        %2198 = vmatmul.mubr.bf16.gmra.mrb[0].mxu0 %v644
        %v2199 = vpop.f32.mrb[0].mxu0
        %v2200 = vadd.f32 0.0, %v2199
        %v2201 = vpop.f32.mrb[0].mxu0
        %v2202 = vpop.f32.mrb[0].mxu0
        %v2203 = vadd.f32 0.0, %v2202
        %v2204 = vpop.f32.mrb[0].mxu0
        %2205 = vmatprep.mubr.bf16.mxu0 %v648
        %2206 = vmatmul.mubr.bf16.gmra.mrb[0].mxu0 %v647
        %v2207 = vpop.f32.mrb[0].mxu0
        %v2208 = vadd.f32 0.0, %v2207
        %v2209 = vpop.f32.mrb[0].mxu0
        %v2210 = vpop.f32.mrb[0].mxu0
        %v2211 = vadd.f32 0.0, %v2210
        %v2212 = vpop.f32.mrb[0].mxu0
        %2213 = vmatprep.mubr.bf16.mxu0 %v651
        %2214 = vmatmul.mubr.bf16.gmra.mrb[0].mxu0 %v650
        %v2215 = vpop.f32.mrb[0].mxu0
        %v2216 = vadd.f32 0.0, %v2215
        %v2217 = vpop.f32.mrb[0].mxu0
        %v2218 = vpop.f32.mrb[0].mxu0
        %v2219 = vadd.f32 0.0, %v2218
        %v2220 = vpop.f32.mrb[0].mxu0
        %2221 = vmatprep.mubr.bf16.mxu0 %v654
        %2222 = vmatmul.mubr.bf16.gmra.mrb[0].mxu0 %v653
        %v2223 = vpop.f32.mrb[0].mxu0
        %v2224 = vadd.f32 0.0, %v2223
        %v2225 = vpop.f32.mrb[0].mxu0
        %v2226 = vpop.f32.mrb[0].mxu0
        %v2227 = vadd.f32 0.0, %v2226
        %v2228 = vpop.f32.mrb[0].mxu0
        %2229 = vmatprep.mubr.bf16.mxu0 %v657
        %2230 = vmatmul.mubr.bf16.gmra.mrb[0].mxu0 %v656
        %v2231 = vpop.f32.mrb[0].mxu0
        %v2232 = vadd.f32 0.0, %v2231
        %v2233 = vpop.f32.mrb[0].mxu0
        %v2234 = vpop.f32.mrb[0].mxu0
        %v2235 = vadd.f32 0.0, %v2234
        %v2236 = vpop.f32.mrb[0].mxu0
        %2237 = vmatprep.mubr.bf16.mxu0 %v660
        %2238 = vmatmul.mubr.bf16.gmra.mrb[0].mxu0 %v659
        %v2239 = vpop.f32.mrb[0].mxu0
        %v2240 = vadd.f32 0.0, %v2239
        %v2241 = vpop.f32.mrb[0].mxu0
        %v2242 = vpop.f32.mrb[0].mxu0
        %v2243 = vadd.f32 0.0, %v2242
        %v2244 = vpop.f32.mrb[0].mxu0
        %2245 = vmatprep.mubr.bf16.mxu0 %v663
        %2246 = vmatmul.mubr.bf16.gmra.mrb[0].mxu0 %v662
        %v2247 = vpop.f32.mrb[0].mxu0
        %v2248 = vadd.f32 0.0, %v2247
        %v2249 = vpop.f32.mrb[0].mxu0
        %v2250 = vpop.f32.mrb[0].mxu0
        %v2251 = vadd.f32 0.0, %v2250
        %v2252 = vpop.f32.mrb[0].mxu0
        %2253 = vmatprep.mubr.bf16.mxu0 %v666
        %2254 = vmatmul.mubr.bf16.gmra.mrb[0].mxu0 %v665
        %v2255 = vpop.f32.mrb[0].mxu0
        %v2256 = vadd.f32 0.0, %v2255
        %v2257 = vpop.f32.mrb[0].mxu0
        %v2258 = vpop.f32.mrb[0].mxu0
        %v2259 = vadd.f32 0.0, %v2258
        %v2260 = vpop.f32.mrb[0].mxu0
        %2261 = vmatprep.mubr.bf16.mxu0 %v669
        %2262 = vmatmul.mubr.bf16.gmra.mrb[0].mxu0 %v668
        %v2263 = vpop.f32.mrb[0].mxu0
        %v2264 = vadd.f32 0.0, %v2263
        %v2265 = vpop.f32.mrb[0].mxu0
        %v2266 = vpop.f32.mrb[0].mxu0
        %v2267 = vadd.f32 0.0, %v2266
        %v2268 = vpop.f32.mrb[0].mxu0
        %2269 = vmatprep.mubr.bf16.mxu0 %v1299
        %2270 = vmatmul.mubr.bf16.gmra.mrb[0].mxu0 %v1298
        %v2271 = vpop.f32.mrb[0].mxu0
        %v2272 = vadd.f32 0.0, %v2271
        %v2273 = vpop.f32.mrb[0].mxu0
        %v2274 = vpop.f32.mrb[0].mxu0
        %v2275 = vadd.f32 0.0, %v2274
        %v2276 = vpop.f32.mrb[0].mxu0
        %2277 = vmatprep.mubr.bf16.mxu0 %v1930
        %2278 = vmatmul.mubr.bf16.gmra.mrb[0].mxu0 %v1929
        %v2279 = vpop.f32.mrb[0].mxu0
        %v2280 = vadd.f32 0.0, %v2279
        %v2281 = vpop.f32.mrb[0].mxu0
        %v2282 = vpop.f32.mrb[0].mxu0
        %v2283 = vadd.f32 0.0, %v2282
        %v2284 = vpop.f32.mrb[0].mxu0
        %2285 = vdwg.mxu0
        %2286 = vmatprep.subr.bf16.mxu0 0
        %2287 = vmatpush1.bf16.msra.mxu0 %v2093
        %2288 = vmatprep.subr.bf16.mxu0 0
        %2289 = vmatpush1.bf16.msra.mxu0 %v2094
        %2290 = vmatprep.subr.bf16.mxu0 0
        %2291 = vmatpush1.bf16.msra.mxu0 %v2095
        %2292 = vmatprep.subr.bf16.mxu0 0
        %2293 = vmatpush1.bf16.msra.mxu0 %v2096
        %2294 = vmatprep.subr.bf16.mxu0 0
        %2295 = vmatpush1.bf16.msra.mxu0 %v2097
        %2296 = vmatprep.subr.bf16.mxu0 0
        %2297 = vmatpush1.bf16.msra.mxu0 %v2098
        %2298 = vmatprep.subr.bf16.mxu0 0
        %2299 = vmatpush1.bf16.msra.mxu0 %v2099
        %2300 = vmatprep.subr.bf16.mxu0 0
        %2301 = vmatpush1.bf16.msra.mxu0 %v2100
        %2302 = vmatprep.subr.bf16.mxu0 0
        %2303 = vmatpush1.bf16.msra.mxu0 0
        %2304 = vmatprep.subr.bf16.mxu0 0
        %2305 = vmatpush1.bf16.msra.mxu0 0
        %2306 = vmatprep.subr.bf16.mxu0 0
        %2307 = vmatpush1.bf16.msra.mxu0 0
        %2308 = vmatprep.subr.bf16.mxu0 0
        %2309 = vmatpush1.bf16.msra.mxu0 0
        %2310 = vmatprep.subr.bf16.mxu0 0
        %2311 = vmatpush1.bf16.msra.mxu0 0
        %2312 = vmatprep.subr.bf16.mxu0 0
        %2313 = vmatpush1.bf16.msra.mxu0 0
        %2314 = vmatprep.subr.bf16.mxu0 0
        %2315 = vmatpush1.bf16.msra.mxu0 0
        %2316 = vmatprep.subr.bf16.mxu0 0
        %2317 = vmatpush1.bf16.msra.mxu0 0
        %2318 = vmatprep.mubr.bf16.mxu0 0
        %2319 = vmatmul.mubr.bf16.gmra.mrb[0].mxu0 %v631
        %v2320 = vpop.f32.mrb[0].mxu0
        %v2321 = vadd.f32 %v2160, %v2320
        %v2322 = vpop.f32.mrb[0].mxu0
        %v2323 = vpop.f32.mrb[0].mxu0
        %v2324 = vadd.f32 %v2163, %v2323
        %v2325 = vpop.f32.mrb[0].mxu0
        %2326 = vmatprep.mubr.bf16.mxu0 0
        %2327 = vmatmul.mubr.bf16.gmra.mrb[0].mxu0 %v634
        %v2328 = vpop.f32.mrb[0].mxu0
        %v2329 = vadd.f32 %v2168, %v2328
        %v2330 = vpop.f32.mrb[0].mxu0
        %v2331 = vpop.f32.mrb[0].mxu0
        %v2332 = vadd.f32 %v2171, %v2331
        %v2333 = vpop.f32.mrb[0].mxu0
        %2334 = vmatprep.mubr.bf16.mxu0 0
        %2335 = vmatmul.mubr.bf16.gmra.mrb[0].mxu0 %v637
        %v2336 = vpop.f32.mrb[0].mxu0
        %v2337 = vadd.f32 %v2176, %v2336
        %v2338 = vpop.f32.mrb[0].mxu0
        %v2339 = vpop.f32.mrb[0].mxu0
        %v2340 = vadd.f32 %v2179, %v2339
        %v2341 = vpop.f32.mrb[0].mxu0
        %2342 = vmatprep.mubr.bf16.mxu0 0
        %2343 = vmatmul.mubr.bf16.gmra.mrb[0].mxu0 %v640
        %v2344 = vpop.f32.mrb[0].mxu0
        %v2345 = vadd.f32 %v2184, %v2344
        %v2346 = vpop.f32.mrb[0].mxu0
        %v2347 = vpop.f32.mrb[0].mxu0
        %v2348 = vadd.f32 %v2187, %v2347
        %v2349 = vpop.f32.mrb[0].mxu0
        %2350 = vmatprep.mubr.bf16.mxu0 0
        %2351 = vmatmul.mubr.bf16.gmra.mrb[0].mxu0 %v643
        %v2352 = vpop.f32.mrb[0].mxu0
        %v2353 = vadd.f32 %v2192, %v2352
        %v2354 = vpop.f32.mrb[0].mxu0
        %v2355 = vpop.f32.mrb[0].mxu0
        %v2356 = vadd.f32 %v2195, %v2355
        %v2357 = vpop.f32.mrb[0].mxu0
        %2358 = vmatprep.mubr.bf16.mxu0 0
        %2359 = vmatmul.mubr.bf16.gmra.mrb[0].mxu0 %v646
        %v2360 = vpop.f32.mrb[0].mxu0
        %v2361 = vadd.f32 %v2200, %v2360
        %v2362 = vpop.f32.mrb[0].mxu0
        %v2363 = vpop.f32.mrb[0].mxu0
        %v2364 = vadd.f32 %v2203, %v2363
        %v2365 = vpop.f32.mrb[0].mxu0
        %2366 = vmatprep.mubr.bf16.mxu0 0
        %2367 = vmatmul.mubr.bf16.gmra.mrb[0].mxu0 %v649
        %v2368 = vpop.f32.mrb[0].mxu0
        %v2369 = vadd.f32 %v2208, %v2368
        %v2370 = vpop.f32.mrb[0].mxu0
        %v2371 = vpop.f32.mrb[0].mxu0
        %v2372 = vadd.f32 %v2211, %v2371
        %v2373 = vpop.f32.mrb[0].mxu0
        %2374 = vmatprep.mubr.bf16.mxu0 0
        %2375 = vmatmul.mubr.bf16.gmra.mrb[0].mxu0 %v652
        %v2376 = vpop.f32.mrb[0].mxu0
        %v2377 = vadd.f32 %v2216, %v2376
        %v2378 = vpop.f32.mrb[0].mxu0
        %v2379 = vpop.f32.mrb[0].mxu0
        %v2380 = vadd.f32 %v2219, %v2379
        %v2381 = vpop.f32.mrb[0].mxu0
        %2382 = vmatprep.mubr.bf16.mxu0 0
        %2383 = vmatmul.mubr.bf16.gmra.mrb[0].mxu0 %v655
        %v2384 = vpop.f32.mrb[0].mxu0
        %v2385 = vadd.f32 %v2224, %v2384
        %v2386 = vpop.f32.mrb[0].mxu0
        %v2387 = vpop.f32.mrb[0].mxu0
        %v2388 = vadd.f32 %v2227, %v2387
        %v2389 = vpop.f32.mrb[0].mxu0
        %2390 = vmatprep.mubr.bf16.mxu0 0
        %2391 = vmatmul.mubr.bf16.gmra.mrb[0].mxu0 %v658
        %v2392 = vpop.f32.mrb[0].mxu0
        %v2393 = vadd.f32 %v2232, %v2392
        %v2394 = vpop.f32.mrb[0].mxu0
        %v2395 = vpop.f32.mrb[0].mxu0
        %v2396 = vadd.f32 %v2235, %v2395
        %v2397 = vpop.f32.mrb[0].mxu0
        %2398 = vmatprep.mubr.bf16.mxu0 0
        %2399 = vmatmul.mubr.bf16.gmra.mrb[0].mxu0 %v661
        %v2400 = vpop.f32.mrb[0].mxu0
        %v2401 = vadd.f32 %v2240, %v2400
        %v2402 = vpop.f32.mrb[0].mxu0
        %v2403 = vpop.f32.mrb[0].mxu0
        %v2404 = vadd.f32 %v2243, %v2403
        %v2405 = vpop.f32.mrb[0].mxu0
        %2406 = vmatprep.mubr.bf16.mxu0 0
        %2407 = vmatmul.mubr.bf16.gmra.mrb[0].mxu0 %v664
        %v2408 = vpop.f32.mrb[0].mxu0
        %v2409 = vadd.f32 %v2248, %v2408
        %v2410 = vpop.f32.mrb[0].mxu0
        %v2411 = vpop.f32.mrb[0].mxu0
        %v2412 = vadd.f32 %v2251, %v2411
        %v2413 = vpop.f32.mrb[0].mxu0
        %2414 = vmatprep.mubr.bf16.mxu0 0
        %2415 = vmatmul.mubr.bf16.gmra.mrb[0].mxu0 %v667
        %v2416 = vpop.f32.mrb[0].mxu0
        %v2417 = vadd.f32 %v2256, %v2416
        %v2418 = vpop.f32.mrb[0].mxu0
        %v2419 = vpop.f32.mrb[0].mxu0
        %v2420 = vadd.f32 %v2259, %v2419
        %v2421 = vpop.f32.mrb[0].mxu0
        %2422 = vmatprep.mubr.bf16.mxu0 0
        %2423 = vmatmul.mubr.bf16.gmra.mrb[0].mxu0 %v670
        %v2424 = vpop.f32.mrb[0].mxu0
        %v2425 = vadd.f32 %v2264, %v2424
        %v2426 = vpop.f32.mrb[0].mxu0
        %v2427 = vpop.f32.mrb[0].mxu0
        %v2428 = vadd.f32 %v2267, %v2427
        %v2429 = vpop.f32.mrb[0].mxu0
        %2430 = vmatprep.mubr.bf16.mxu0 0
        %2431 = vmatmul.mubr.bf16.gmra.mrb[0].mxu0 %v1300
        %v2432 = vpop.f32.mrb[0].mxu0
        %v2433 = vadd.f32 %v2272, %v2432
        %v2434 = vpop.f32.mrb[0].mxu0
        %v2435 = vpop.f32.mrb[0].mxu0
        %v2436 = vadd.f32 %v2275, %v2435
        %v2437 = vpop.f32.mrb[0].mxu0
        %2438 = vmatprep.mubr.bf16.mxu0 0
        %2439 = vmatmul.mubr.bf16.gmra.mrb[0].mxu0 %v1931
        %v2440 = vpop.f32.mrb[0].mxu0
        %v2441 = vadd.f32 %v2280, %v2440
        %v2442 = vpop.f32.mrb[0].mxu0
        %v2443 = vpop.f32.mrb[0].mxu0
        %v2444 = vadd.f32 %v2283, %v2443
        %v2445 = vpop.f32.mrb[0].mxu0
        %2446 = vdwg.mxu0
        %v2447 = vadd.f32 %v1897, %v2321
        %v2448 = vadd.f32 %v1898, %v2324
        %v2449 = vadd.f32 %v1899, %v2329
        %v2450 = vadd.f32 %v1900, %v2332
        %v2451 = vadd.f32 %v1901, %v2337
        %v2452 = vadd.f32 %v1902, %v2340
        %v2453 = vadd.f32 %v1903, %v2345
        %v2454 = vadd.f32 %v1904, %v2348
        %v2455 = vadd.f32 %v1905, %v2353
        %v2456 = vadd.f32 %v1906, %v2356
        %v2457 = vadd.f32 %v1907, %v2361
        %v2458 = vadd.f32 %v1908, %v2364
        %v2459 = vadd.f32 %v1909, %v2369
        %v2460 = vadd.f32 %v1910, %v2372
        %v2461 = vadd.f32 %v1911, %v2377
        %v2462 = vadd.f32 %v1912, %v2380
        %v2463 = vadd.f32 %v1913, %v2385
        %v2464 = vadd.f32 %v1914, %v2388
        %v2465 = vadd.f32 %v1915, %v2393
        %v2466 = vadd.f32 %v1916, %v2396
        %v2467 = vadd.f32 %v1917, %v2401
        %v2468 = vadd.f32 %v1918, %v2404
        %v2469 = vadd.f32 %v1919, %v2409
        %v2470 = vadd.f32 %v1920, %v2412
        %v2471 = vadd.f32 %v1921, %v2417
        %v2472 = vadd.f32 %v1922, %v2420
        %v2473 = vadd.f32 %v1923, %v2425
        %v2474 = vadd.f32 %v1924, %v2428
        %v2475 = vadd.f32 %v1925, %v2433
        %v2476 = vadd.f32 %v1926, %v2436
        %v2477 = vadd.f32 %v1927, %v2441
        %v2478 = vadd.f32 %v1928, %v2444
        %2479 = vst [vmem:[#allocation2] sm:$0xff] %v2447
        %2480 = vst [vmem:[#allocation2 + $0x8] sm:$0xff] %v2448
        %2481 = vst [vmem:[#allocation2 + $0x10] sm:$0xff] %v2449
        %2482 = vst [vmem:[#allocation2 + $0x18] sm:$0xff] %v2450
        %2483 = vst [vmem:[#allocation2 + $0x20] sm:$0xff] %v2451
        %2484 = vst [vmem:[#allocation2 + $0x28] sm:$0xff] %v2452
        %2485 = vst [vmem:[#allocation2 + $0x30] sm:$0xff] %v2453
        %2486 = vst [vmem:[#allocation2 + $0x38] sm:$0xff] %v2454
        %2487 = vst [vmem:[#allocation2 + $0x40] sm:$0xff] %v2455
        %2488 = vst [vmem:[#allocation2 + $0x48] sm:$0xff] %v2456
        %2489 = vst [vmem:[#allocation2 + $0x50] sm:$0xff] %v2457
        %2490 = vst [vmem:[#allocation2 + $0x58] sm:$0xff] %v2458
        %2491 = vst [vmem:[#allocation2 + $0x60] sm:$0xff] %v2459
        %2492 = vst [vmem:[#allocation2 + $0x68] sm:$0xff] %v2460
        %2493 = vst [vmem:[#allocation2 + $0x70] sm:$0xff] %v2461
        %2494 = vst [vmem:[#allocation2 + $0x78] sm:$0xff] %v2462
        %2495 = vst [vmem:[#allocation2 + $0x80] sm:$0xff] %v2463
        %2496 = vst [vmem:[#allocation2 + $0x88] sm:$0xff] %v2464
        %2497 = vst [vmem:[#allocation2 + $0x90] sm:$0xff] %v2465
        %2498 = vst [vmem:[#allocation2 + $0x98] sm:$0xff] %v2466
        %2499 = vst [vmem:[#allocation2 + $0xa0] sm:$0xff] %v2467
        %2500 = vst [vmem:[#allocation2 + $0xa8] sm:$0xff] %v2468
        %2501 = vst [vmem:[#allocation2 + $0xb0] sm:$0xff] %v2469
        %2502 = vst [vmem:[#allocation2 + $0xb8] sm:$0xff] %v2470
        %2503 = vst [vmem:[#allocation2 + $0xc0] sm:$0xff] %v2471
        %2504 = vst [vmem:[#allocation2 + $0xc8] sm:$0xff] %v2472
        %2505 = vst [vmem:[#allocation2 + $0xd0] sm:$0xff] %v2473
        %2506 = vst [vmem:[#allocation2 + $0xd8] sm:$0xff] %v2474
        %2507 = vst [vmem:[#allocation2 + $0xe0] sm:$0xff] %v2475
        %2508 = vst [vmem:[#allocation2 + $0xe8] sm:$0xff] %v2476
        %2509 = vst [vmem:[#allocation2 + $0xf0] sm:$0xff] %v2477
        %2510 = vst [vmem:[#allocation2 + $0xf8] sm:$0xff] %v2478
        %v2511 = vld [vmem:[#allocation2] sm:$0xff]
        %v2512 = vld [vmem:[#allocation2 + $0x8] sm:$0xff]
        %v2513 = vld [vmem:[#allocation2 + $0x10] sm:$0xff]
        %v2514 = vld [vmem:[#allocation2 + $0x18] sm:$0xff]
        %v2515 = vld [vmem:[#allocation2 + $0x20] sm:$0xff]
        %v2516 = vld [vmem:[#allocation2 + $0x28] sm:$0xff]
        %v2517 = vld [vmem:[#allocation2 + $0x30] sm:$0xff]
        %v2518 = vld [vmem:[#allocation2 + $0x38] sm:$0xff]
        %v2519 = vld [vmem:[#allocation2 + $0x40] sm:$0xff]
        %v2520 = vld [vmem:[#allocation2 + $0x48] sm:$0xff]
        %v2521 = vld [vmem:[#allocation2 + $0x50] sm:$0xff]
        %v2522 = vld [vmem:[#allocation2 + $0x58] sm:$0xff]
        %v2523 = vld [vmem:[#allocation2 + $0x60] sm:$0xff]
        %v2524 = vld [vmem:[#allocation2 + $0x68] sm:$0xff]
        %v2525 = vld [vmem:[#allocation2 + $0x70] sm:$0xff]
        %v2526 = vld [vmem:[#allocation2 + $0x78] sm:$0xff]
        %v2527 = vld [vmem:[#allocation2 + $0x80] sm:$0xff]
        %v2528 = vld [vmem:[#allocation2 + $0x88] sm:$0xff]
        %v2529 = vld [vmem:[#allocation2 + $0x90] sm:$0xff]
        %v2530 = vld [vmem:[#allocation2 + $0x98] sm:$0xff]
        %v2531 = vld [vmem:[#allocation2 + $0xa0] sm:$0xff]
        %v2532 = vld [vmem:[#allocation2 + $0xa8] sm:$0xff]
        %v2533 = vld [vmem:[#allocation2 + $0xb0] sm:$0xff]
        %v2534 = vld [vmem:[#allocation2 + $0xb8] sm:$0xff]
        %v2535 = vld [vmem:[#allocation2 + $0xc0] sm:$0xff]
        %v2536 = vld [vmem:[#allocation2 + $0xc8] sm:$0xff]
        %v2537 = vld [vmem:[#allocation2 + $0xd0] sm:$0xff]
        %v2538 = vld [vmem:[#allocation2 + $0xd8] sm:$0xff]
        %v2539 = vld [vmem:[#allocation2 + $0xe0] sm:$0xff]
        %v2540 = vld [vmem:[#allocation2 + $0xe8] sm:$0xff]
        %v2541 = vld [vmem:[#allocation2 + $0xf0] sm:$0xff]
        %v2542 = vld [vmem:[#allocation2 + $0xf8] sm:$0xff]
        %2543 = vst [vmem:[%s163] sm:$0xff] %v2511
        %2544 = vst [vmem:[%s163 + $0x8] sm:$0xff] %v2512
        %2545 = vst [vmem:[%s163 + $0x10] sm:$0xff] %v2513
        %2546 = vst [vmem:[%s163 + $0x18] sm:$0xff] %v2514
        %2547 = vst [vmem:[%s163 + $0x20] sm:$0xff] %v2515
        %2548 = vst [vmem:[%s163 + $0x28] sm:$0xff] %v2516
        %2549 = vst [vmem:[%s163 + $0x30] sm:$0xff] %v2517
        %2550 = vst [vmem:[%s163 + $0x38] sm:$0xff] %v2518
        %2551 = vst [vmem:[%s163 + $0x40] sm:$0xff] %v2519
        %2552 = vst [vmem:[%s163 + $0x48] sm:$0xff] %v2520
        %2553 = vst [vmem:[%s163 + $0x50] sm:$0xff] %v2521
        %2554 = vst [vmem:[%s163 + $0x58] sm:$0xff] %v2522
        %2555 = vst [vmem:[%s163 + $0x60] sm:$0xff] %v2523
        %2556 = vst [vmem:[%s163 + $0x68] sm:$0xff] %v2524
        %2557 = vst [vmem:[%s163 + $0x70] sm:$0xff] %v2525
        %2558 = vst [vmem:[%s163 + $0x78] sm:$0xff] %v2526
        %2559 = vst [vmem:[%s163 + $0x80] sm:$0xff] %v2527
        %2560 = vst [vmem:[%s163 + $0x88] sm:$0xff] %v2528
        %2561 = vst [vmem:[%s163 + $0x90] sm:$0xff] %v2529
        %2562 = vst [vmem:[%s163 + $0x98] sm:$0xff] %v2530
        %2563 = vst [vmem:[%s163 + $0xa0] sm:$0xff] %v2531
        %2564 = vst [vmem:[%s163 + $0xa8] sm:$0xff] %v2532
        %2565 = vst [vmem:[%s163 + $0xb0] sm:$0xff] %v2533
        %2566 = vst [vmem:[%s163 + $0xb8] sm:$0xff] %v2534
        %2567 = vst [vmem:[%s163 + $0xc0] sm:$0xff] %v2535
        %2568 = vst [vmem:[%s163 + $0xc8] sm:$0xff] %v2536
        %2569 = vst [vmem:[%s163 + $0xd0] sm:$0xff] %v2537
        %2570 = vst [vmem:[%s163 + $0xd8] sm:$0xff] %v2538
        %2571 = vst [vmem:[%s163 + $0xe0] sm:$0xff] %v2539
        %2572 = vst [vmem:[%s163 + $0xe8] sm:$0xff] %v2540
        %2573 = vst [vmem:[%s163 + $0xf0] sm:$0xff] %v2541
        %2574 = vst [vmem:[%s163 + $0xf8] sm:$0xff] %v2542
        %s2575 = sand.u32 %s93, 1
        %s2576 = scalar_lea.sflag [#allocation4], %s2575
        %s2577 = sand.u32 %s93, 1
        %s2578 = smul.addr %s2577, 256
        %s2579 = scalar_lea.vmem [#allocation3], %s2578
        // Predicated region
        $region33: #{tpu_custom_call.1} parent=31 // pred_check
          %p2580 = pneg %p103
        $region34: #{tpu_custom_call.1} parent=31 // pred_check_branch
          %2582 = sbr.rel (%p2580) target = $region36
        $region35: #{tpu_custom_call.1} parent=31 // pred_region
          %s2584 = ssub.s32 4096, 4096
          %2585 = vsyncadd %s2576, %s2584
          %s2586 = smul.addr %s17, 32
          %s2587 = smul.addr %s2586, 128
          %s2588 = scalar_lea.hbm %s3, %s2587
          %s2589 = sshll.u32 %s2579, 4
          %s2590 = int_to_ptr.vmem [resolvable:$true] %s2589
          %2595 = dma.vmem_to_hbm [thread:$0]  %s2590, 4096, %s2588, %s2576, 128, 128, 8
        $region36: #{tpu_custom_call.1} parent=31 // pred_fallthru
          _
      $region32: #{tpu_custom_call.1} parent=5 // pred_fallthru
        _
      %p2596 = scmp.le.s32.totalorder 2, %s12
      // Predicated region
      $region37: #{tpu_custom_call.1} parent=5 // pred_check
        %p2597 = pneg %p2596
      $region38: #{tpu_custom_call.1} parent=5 // pred_check_branch
        %2599 = sbr.rel (%p2597) target = $region40
      $region39: #{tpu_custom_call.1} parent=5 // pred_region
        %s2600 = ssub.s32 %s12, 2
        // Predicated region
        $region41: #{tpu_custom_call.1} parent=39 // pred_check
          %p2601 = pneg %p109
        $region42: #{tpu_custom_call.1} parent=39 // pred_check_branch
          %2603 = sbr.rel (%p2601) target = $region44
        $region43: #{tpu_custom_call.1} parent=39 // pred_region
          %s2604 = sand.u32 %s94, 1
          %s2605 = scalar_lea.sflag [#allocation4], %s2604
          %s2606 = sand.u32 %s94, 1
          %s2607 = smul.addr %s2606, 256
          %s2608 = scalar_lea.vmem [#allocation3], %s2607
          %2609 = dma.done %s2605, 4096
        $region44: #{tpu_custom_call.1} parent=39 // pred_fallthru
          _
      $region40: #{tpu_custom_call.1} parent=5 // pred_fallthru
        _
    $region6: #{tpu_custom_call.1} parent=1 // loop_footer
      %s16 = sadd.s32 1, %s12
    $region7: #{tpu_custom_call.1} parent=1 // loop_footer_branch
      %11 = sbr.rel target = $region3
    $region8: #{tpu_custom_call.1} parent=1 // loop_exit
      _
    %2610 = vsyncpa [#allocation4], 1
    %s2611 = scalar_lea.sflag [#allocation4], 1
    %2612 = vsyncpa %s2611, 1

</llo_original>
